<compile_context>
chip_gen: v6e
topology: v6e:2x2x1
jax: 0.10.0
libtpu: 0.0.40
codegen_flags: <defaults>
</compile_context>

<pallas_src>
import jax
import jax.numpy as jnp
from jax import lax
from jax.experimental import pallas as pl
from jax.experimental.pallas import tpu as pltpu


def encoder_kernel(x_ref, wih_ref, whh_ref, b_ref,
                   w1_ref, b1_ref, w2_ref, b2_ref,
                   out_ref, hid_ref):
    """Fused bidirectional LSTM + FC head, everything resident in VMEM.

    x_ref   : [T*Bp, E]  bf16, TIME-major flattened embedded input (row = t*Bp + b)
    wih_ref : [E, 8H]    bf16, [W_ih_fwd | W_ih_bwd], gate order i,f,g,o per 4H block
    whh_ref : [2H, 4H]   bf16, stacked recurrent weights [[W_hh_fwd],[W_hh_bwd]]
    b_ref   : [1, 8H]    f32,  [(b_ih+b_hh)_fwd | (b_ih+b_hh)_bwd]
    w1/b1, w2/b2 : FC head tanh(fc2(relu(fc1(.))))   (w* bf16, b* f32)
    out_ref : [T*Bp, 2H] f32, time-major BiLSTM output (fwd lanes 0:H, bwd H:2H)
    hid_ref : [2Bp, D]   f32, head on final fwd (rows 0:Bp) / bwd (rows Bp:2Bp)
    """
    B2, D = hid_ref.shape
    Bp = B2 // 2
    twoH = out_ref.shape[1]
    H = twoH // 2
    T = out_ref.shape[0] // Bp

    # ---- hoisted input projection: one bf16 MXU matmul for all timesteps and
    # both directions, f32 accumulate, bias folded in once ----
    gx = jnp.dot(x_ref[...], wih_ref[...],
                 preferred_element_type=jnp.float32) + b_ref[...]        # [T*Bp, 8H]

    # ---- fused per-step pre-activations, assembled OUTSIDE the recurrence:
    # rows 0:Bp   = forward  gates at time s      (lanes 0:4H  of row block s)
    # rows Bp:2Bp = backward gates at time T-1-s  (lanes 4H:8H of row block T-1-s)
    pre = [jnp.concatenate(
               [gx[s * Bp:(s + 1) * Bp, 0:4 * H],
                gx[(T - 1 - s) * Bp:(T - s) * Bp, 4 * H:8 * H]], axis=0)
           for s in range(T)]                                             # T x [2Bp, 4H]

    whh = whh_ref[...]                                                    # [2H, 4H] bf16

    # direction mask: fused state block keeps h_fwd in lanes 0:H for rows 0:Bp
    # and h_bwd in lanes H:2H for rows Bp:2Bp (zeros elsewhere), so one
    # [2Bp,2H] @ [2H,4H] matmul applies the right Whh to each direction.
    rows = lax.broadcasted_iota(jnp.int32, (B2, 2 * H), 0)
    cols = lax.broadcasted_iota(jnp.int32, (B2, 2 * H), 1)
    dmask = (((rows < Bp) & (cols < H)) |
             ((rows >= Bp) & (cols >= H))).astype(jnp.float32)            # [2Bp, 2H]

    h = jnp.zeros((B2, H), jnp.float32)
    c = jnp.zeros((B2, H), jnp.float32)
    hs = []

    # ---- fused, fully-unrolled bidirectional recurrence (T small & static;
    # switch to lax.fori_loop(..., unroll=k) if T grows) ----
    for s in range(T):
        h2 = (jnp.concatenate([h, h], axis=1) * dmask).astype(whh.dtype)  # [2Bp, 2H]
        gates = pre[s] + jnp.dot(h2, whh,
                                 preferred_element_type=jnp.float32)      # [2Bp, 4H]
        sg = jax.nn.sigmoid(gates)      # one full-width EUP launch
        tg = jnp.tanh(gates)            # one full-width EUP launch
        i = sg[:, 0 * H:1 * H]
        f = sg[:, 1 * H:2 * H]
        g = tg[:, 2 * H:3 * H]
        o = sg[:, 3 * H:4 * H]
        c = f * c + i * g
        h = o * jnp.tanh(c)             # third EUP launch
        hs.append(h)

    # ---- ONE dense store of the assembled time-major output ----
    # row block t = [h_fwd(t) | h_bwd(t)]; h_bwd(t) was produced at step T-1-t.
    out_rows = [jnp.concatenate([hs[t][0:Bp, :], hs[T - 1 - t][Bp:B2, :]], axis=1)
                for t in range(T)]
    out_ref[...] = jnp.concatenate(out_rows, axis=0)                      # [T*Bp, 2H]

    # ---- FC head fused across both directions: tanh(fc2(relu(fc1(h_n)))) ----
    hn = hs[T - 1]                                                        # [2Bp, H]
    z = jnp.dot(hn.astype(w1_ref.dtype), w1_ref[...],
                preferred_element_type=jnp.float32) + b1_ref[...]
    z = jnp.maximum(z, 0.0)
    z = jnp.dot(z.astype(w2_ref.dtype), w2_ref[...],
                preferred_element_type=jnp.float32) + b2_ref[...]
    hid_ref[...] = jnp.tanh(z)                                            # [2Bp, D]


def init_params(key, vocab_size, max_measure, seq_len, emb_size, H, D):
    ks = jax.random.split(key, 13)

    def u(k, shape, scale):
        return jax.random.uniform(k, shape, jnp.float32, -scale, scale)

    note_emb = jax.random.normal(ks[0], (vocab_size, emb_size), jnp.float32)
    note_emb = note_emb.at[15].set(0.0)                       # padding_idx=15
    measure_emb = jax.random.normal(ks[1], (max_measure + 3, emb_size), jnp.float32)
    measure_emb = measure_emb.at[0].set(0.0)                  # padding_idx=0
    position_emb = jax.random.normal(ks[2], (seq_len, emb_size), jnp.float32)

    s = float(1.0 / jnp.sqrt(H))
    return dict(
        note_emb=note_emb, measure_emb=measure_emb, position_emb=position_emb,
        # LSTM, forward dir (weights stored transposed, gate order i,f,g,o).
        # b_* plays the role of (b_ih + b_hh).
        w_ih_f=u(ks[3], (emb_size, 4 * H), s),
        w_hh_f=u(ks[4], (H, 4 * H), s),
        b_f=u(ks[5], (1, 4 * H), s),
        # LSTM, backward dir
        w_ih_b=u(ks[6], (emb_size, 4 * H), s),
        w_hh_b=u(ks[7], (H, 4 * H), s),
        b_b=u(ks[8], (1, 4 * H), s),
        # FC head
        w1=u(ks[9], (H, H), s), b1=u(ks[10], (1, H), s),
        w2=u(ks[11], (H, D), s), b2=u(ks[12], (1, D), s),
    )


def encoder_forward(note, measure, params):
    """note, measure: int32 [B, T].  Returns (output [B,T,2H], hidden [B,2D])."""
    B, T = note.shape
    # --- embedding (gather glue in plain JAX) ---
    pos = jnp.arange(T)
    emb = (params['note_emb'][note]
           + params['measure_emb'][measure + 3]
           + params['position_emb'][pos][None, :, :]).astype(jnp.float32)  # [B,T,E]
    # nn.Dropout(p=0.2) is identity in eval mode.
    # TODO(synk): training-mode dropout would need a PRNG path (pltpu.prng_*).
    E = emb.shape[-1]
    H = params['w_hh_f'].shape[0]
    D = params['w2'].shape[1]

    # pad batch so the fused 2B-row state block fills whole 8-row sublane tiles
    Bp = ((B + 3) // 4) * 4
    if Bp != B:
        emb = jnp.pad(emb, ((0, Bp - B), (0, 0), (0, 0)))

    # TIME-major flatten (row = t*Bp + b) -> contiguous per-step slabs in-kernel;
    # MXU operands go in as bf16 (native MXU dtype), accumulation stays f32.
    x = jnp.transpose(emb, (1, 0, 2)).reshape(T * Bp, E).astype(jnp.bfloat16)

    w_ih = jnp.concatenate([params['w_ih_f'], params['w_ih_b']],
                           axis=1).astype(jnp.bfloat16)                    # [E, 8H]
    w_hh = jnp.concatenate([params['w_hh_f'], params['w_hh_b']],
                           axis=0).astype(jnp.bfloat16)                    # [2H, 4H]
    b = jnp.concatenate([params['b_f'], params['b_b']], axis=1)            # [1, 8H]
    w1 = params['w1'].astype(jnp.bfloat16)
    w2 = params['w2'].astype(jnp.bfloat16)

    flops = int(2 * (T * Bp) * E * (8 * H)                 # hoisted input projection
                + 2 * T * (2 * Bp) * (2 * H) * (4 * H)     # fused recurrent matmuls
                + 2 * (2 * Bp) * (H * H + H * D))          # FC head
    transcendentals = int(T * (2 * Bp) * (4 * H + 4 * H + H) + (2 * Bp) * D)
    bytes_accessed = int(2 * (T * Bp * E + E * 8 * H + 2 * H * 4 * H + H * H + H * D)
                         + 4 * (8 * H + H + D + T * Bp * 2 * H + 2 * Bp * D))

    vmem = pl.BlockSpec(memory_space=pltpu.MemorySpace.VMEM)
    # All operands live in VMEM for the whole grid-less call (~100 KiB here).
    # Scaling guard: if B*T or H grow, add a batch-block grid + BlockSpec tiling
    # and pltpu.CompilerParams(vmem_limit_bytes=...) (v7x has only 64 MiB VMEM).
    out_flat, hid2 = pl.pallas_call(
        encoder_kernel,
        out_shape=(jax.ShapeDtypeStruct((T * Bp, 2 * H), jnp.float32),
                   jax.ShapeDtypeStruct((2 * Bp, D), jnp.float32)),
        in_specs=[vmem] * 8,
        out_specs=(vmem, vmem),
        cost_estimate=pl.CostEstimate(flops=flops,
                                      transcendentals=transcendentals,
                                      bytes_accessed=bytes_accessed),
    )(x, w_ih, w_hh, b, w1, params['b1'], w2, params['b2'])

    # wrapper-side layout glue (XLA): strip batch padding, batch-first output,
    # per-direction rows -> lane interleave for the hidden head.
    output = jnp.transpose(out_flat.reshape(T, Bp, 2 * H)[:, :B, :], (1, 0, 2))
    hidden = jnp.concatenate([hid2[0:B, :], hid2[Bp:Bp + B, :]], axis=1)   # [B, 2D]
    return output, hidden


def reference_forward(note, measure, params):
    """Pure-JAX f32 reference mirroring the PyTorch forward (eval mode)."""
    B, T = note.shape
    H = params['w_hh_f'].shape[0]
    pos = jnp.arange(T)
    emb = (params['note_emb'][note]
           + params['measure_emb'][measure + 3]
           + params['position_emb'][pos][None, :, :]).astype(jnp.float32)
    emb_tm = jnp.transpose(emb, (1, 0, 2))

    def run(seq, wih, whh, b):
        def step(carry, x_t):
            h, c = carry
            g = x_t @ wih + h @ whh + b
            i = jax.nn.sigmoid(g[:, :H])
            f = jax.nn.sigmoid(g[:, H:2 * H])
            gg = jnp.tanh(g[:, 2 * H:3 * H])
            o = jax.nn.sigmoid(g[:, 3 * H:4 * H])
            c = f * c + i * gg
            h = o * jnp.tanh(c)
            return (h, c), h
        h0 = jnp.zeros((B, H), jnp.float32)
        (hT, _), outs = lax.scan(step, (h0, h0), seq)
        return outs, hT

    out_f, hf = run(emb_tm, params['w_ih_f'], params['w_hh_f'], params['b_f'])
    out_b_rev, hb = run(emb_tm[::-1], params['w_ih_b'], params['w_hh_b'], params['b_b'])
    out_b = out_b_rev[::-1]

    def head(h):
        z = jnp.maximum(h @ params['w1'] + params['b1'], 0.0)
        return jnp.tanh(z @ params['w2'] + params['b2'])

    output = jnp.concatenate([out_f, out_b], axis=-1).transpose(1, 0, 2)
    hidden = jnp.concatenate([head(hf), head(hb)], axis=1)
    return output, hidden


if __name__ == "__main__":
    vocab_size, max_measure, seq_len = 32, 8, 8
    emb_size, enc_hidden, dec_hidden = 16, 32, 32
    batch = 2

    key = jax.random.PRNGKey(0)
    kp, kn, km = jax.random.split(key, 3)
    params = init_params(kp, vocab_size, max_measure, seq_len,
                         emb_size, enc_hidden, dec_hidden)
    note = jax.random.randint(kn, (batch, seq_len), 0, vocab_size, dtype=jnp.int32)
    measure = jax.random.randint(km, (batch, seq_len), 0, max_measure, dtype=jnp.int32)

    output, hidden = encoder_forward(note, measure, params)
    jax.block_until_ready((output, hidden))

    ref_out, ref_hid = reference_forward(note, measure, params)
    assert output.shape == (batch, seq_len, 2 * enc_hidden)
    assert hidden.shape == (batch, 2 * dec_hidden)
    # bf16 MXU operands in the kernel vs all-f32 reference => bf16-level tolerance.
    assert jnp.allclose(output, ref_out, atol=2e-2, rtol=2e-2)
    assert jnp.allclose(hidden, ref_hid, atol=2e-2, rtol=2e-2)
    print("KERNEL_OK")
</pallas_src>

<mosaic_0001>
module attributes {stable_mosaic.version = 11 : i64} {
  func.func @encoder_kernel(%arg0: memref<32x16xbf16, #tpu.memory_space<vmem>>, %arg1: memref<16x256xbf16, #tpu.memory_space<vmem>>, %arg2: memref<64x128xbf16, #tpu.memory_space<vmem>>, %arg3: memref<1x256xf32, #tpu.memory_space<vmem>>, %arg4: memref<32x32xbf16, #tpu.memory_space<vmem>>, %arg5: memref<1x32xf32, #tpu.memory_space<vmem>>, %arg6: memref<32x32xbf16, #tpu.memory_space<vmem>>, %arg7: memref<1x32xf32, #tpu.memory_space<vmem>>, %arg8: memref<32x64xf32, #tpu.memory_space<vmem>>, %arg9: memref<8x32xf32, #tpu.memory_space<vmem>>) attributes {dimension_semantics = [], scalar_prefetch = 0 : i64, scratch_operands = 0 : i64, tpu.core_type = #tpu.core_type<tc>} {
    %c0 = arith.constant 0 : index
    %c0_0 = arith.constant 0 : index
    %0 = vector.load %arg0[%c0, %c0_0] : memref<32x16xbf16, #tpu.memory_space<vmem>>, vector<32x16xbf16>
    %c0_1 = arith.constant 0 : index
    %c0_2 = arith.constant 0 : index
    %1 = vector.load %arg1[%c0_1, %c0_2] : memref<16x256xbf16, #tpu.memory_space<vmem>>, vector<16x256xbf16>
    %cst = arith.constant dense<0.000000e+00> : vector<32x256xf32>
    %2 = tpu.matmul %0, %1, %cst {dimension_numbers = #tpu.dot_dimension_numbers<[1], [0], [0], [1], [0, 0, 1, 1], [], []>} : vector<32x16xbf16>, vector<16x256xbf16>, vector<32x256xf32> -> vector<32x256xf32>
    %c0_3 = arith.constant 0 : index
    %c0_4 = arith.constant 0 : index
    %3 = vector.load %arg3[%c0_3, %c0_4] : memref<1x256xf32, #tpu.memory_space<vmem>>, vector<1x256xf32>
    %4 = vector.broadcast %3 : vector<1x256xf32> to vector<32x256xf32>
    %5 = arith.addf %2, %4 : vector<32x256xf32>
    %6 = vector.extract_strided_slice %5 {offsets = [0, 0], sizes = [4, 128], strides = [1, 1]} : vector<32x256xf32> to vector<4x128xf32>
    %7 = vector.extract_strided_slice %5 {offsets = [28, 128], sizes = [4, 128], strides = [1, 1]} : vector<32x256xf32> to vector<4x128xf32>
    %8 = tpu.concatenate %6, %7 in 0 : vector<4x128xf32>, vector<4x128xf32> -> vector<8x128xf32>
    %9 = vector.extract_strided_slice %5 {offsets = [4, 0], sizes = [4, 128], strides = [1, 1]} : vector<32x256xf32> to vector<4x128xf32>
    %10 = vector.extract_strided_slice %5 {offsets = [24, 128], sizes = [4, 128], strides = [1, 1]} : vector<32x256xf32> to vector<4x128xf32>
    %11 = tpu.concatenate %9, %10 in 0 : vector<4x128xf32>, vector<4x128xf32> -> vector<8x128xf32>
    %12 = vector.extract_strided_slice %5 {offsets = [8, 0], sizes = [4, 128], strides = [1, 1]} : vector<32x256xf32> to vector<4x128xf32>
    %13 = vector.extract_strided_slice %5 {offsets = [20, 128], sizes = [4, 128], strides = [1, 1]} : vector<32x256xf32> to vector<4x128xf32>
    %14 = tpu.concatenate %12, %13 in 0 : vector<4x128xf32>, vector<4x128xf32> -> vector<8x128xf32>
    %15 = vector.extract_strided_slice %5 {offsets = [12, 0], sizes = [4, 128], strides = [1, 1]} : vector<32x256xf32> to vector<4x128xf32>
    %16 = vector.extract_strided_slice %5 {offsets = [16, 128], sizes = [4, 128], strides = [1, 1]} : vector<32x256xf32> to vector<4x128xf32>
    %17 = tpu.concatenate %15, %16 in 0 : vector<4x128xf32>, vector<4x128xf32> -> vector<8x128xf32>
    %18 = vector.extract_strided_slice %5 {offsets = [16, 0], sizes = [4, 128], strides = [1, 1]} : vector<32x256xf32> to vector<4x128xf32>
    %19 = vector.extract_strided_slice %5 {offsets = [12, 128], sizes = [4, 128], strides = [1, 1]} : vector<32x256xf32> to vector<4x128xf32>
    %20 = tpu.concatenate %18, %19 in 0 : vector<4x128xf32>, vector<4x128xf32> -> vector<8x128xf32>
    %21 = vector.extract_strided_slice %5 {offsets = [20, 0], sizes = [4, 128], strides = [1, 1]} : vector<32x256xf32> to vector<4x128xf32>
    %22 = vector.extract_strided_slice %5 {offsets = [8, 128], sizes = [4, 128], strides = [1, 1]} : vector<32x256xf32> to vector<4x128xf32>
    %23 = tpu.concatenate %21, %22 in 0 : vector<4x128xf32>, vector<4x128xf32> -> vector<8x128xf32>
    %24 = vector.extract_strided_slice %5 {offsets = [24, 0], sizes = [4, 128], strides = [1, 1]} : vector<32x256xf32> to vector<4x128xf32>
    %25 = vector.extract_strided_slice %5 {offsets = [4, 128], sizes = [4, 128], strides = [1, 1]} : vector<32x256xf32> to vector<4x128xf32>
    %26 = tpu.concatenate %24, %25 in 0 : vector<4x128xf32>, vector<4x128xf32> -> vector<8x128xf32>
    %27 = vector.extract_strided_slice %5 {offsets = [28, 0], sizes = [4, 128], strides = [1, 1]} : vector<32x256xf32> to vector<4x128xf32>
    %28 = vector.extract_strided_slice %5 {offsets = [0, 128], sizes = [4, 128], strides = [1, 1]} : vector<32x256xf32> to vector<4x128xf32>
    %29 = tpu.concatenate %27, %28 in 0 : vector<4x128xf32>, vector<4x128xf32> -> vector<8x128xf32>
    %c0_5 = arith.constant 0 : index
    %c0_6 = arith.constant 0 : index
    %30 = vector.load %arg2[%c0_5, %c0_6] : memref<64x128xbf16, #tpu.memory_space<vmem>>, vector<64x128xbf16>
    %31 = tpu.iota {dimensions = array<i32: 0>} : vector<8x64xi32>
    %32 = tpu.iota {dimensions = array<i32: 1>} : vector<8x64xi32>
    %c4_i32 = arith.constant 4 : i32
    %33 = vector.broadcast %c4_i32 : i32 to vector<8x64xi32>
    %34 = arith.cmpi slt, %31, %33 : vector<8x64xi32>
    %c32_i32 = arith.constant 32 : i32
    %35 = vector.broadcast %c32_i32 : i32 to vector<8x64xi32>
    %36 = arith.cmpi slt, %32, %35 : vector<8x64xi32>
    %37 = arith.andi %34, %36 : vector<8x64xi1>
    %c4_i32_7 = arith.constant 4 : i32
    %38 = vector.broadcast %c4_i32_7 : i32 to vector<8x64xi32>
    %39 = arith.cmpi sge, %31, %38 : vector<8x64xi32>
    %c32_i32_8 = arith.constant 32 : i32
    %40 = vector.broadcast %c32_i32_8 : i32 to vector<8x64xi32>
    %41 = arith.cmpi sge, %32, %40 : vector<8x64xi32>
    %42 = arith.andi %39, %41 : vector<8x64xi1>
    %43 = arith.ori %37, %42 : vector<8x64xi1>
    %44 = arith.extui %43 : vector<8x64xi1> to vector<8x64xi32>
    %45 = arith.sitofp %44 : vector<8x64xi32> to vector<8x64xf32>
    %cst_9 = arith.constant 0.000000e+00 : f32
    %46 = vector.broadcast %cst_9 : f32 to vector<8x32xf32>
    %cst_10 = arith.constant 0.000000e+00 : f32
    %47 = vector.broadcast %cst_10 : f32 to vector<8x32xf32>
    %48 = tpu.concatenate %46, %46 in 1 : vector<8x32xf32>, vector<8x32xf32> -> vector<8x64xf32>
    %49 = arith.mulf %48, %45 : vector<8x64xf32>
    %50 = arith.truncf %49 : vector<8x64xf32> to vector<8x64xbf16>
    %cst_11 = arith.constant dense<0.000000e+00> : vector<8x128xf32>
    %51 = tpu.matmul %50, %30, %cst_11 {dimension_numbers = #tpu.dot_dimension_numbers<[1], [0], [0], [1], [0, 0, 1, 1], [], []>} : vector<8x64xbf16>, vector<64x128xbf16>, vector<8x128xf32> -> vector<8x128xf32>
    %52 = arith.addf %8, %51 : vector<8x128xf32>
    %53 = arith.negf %52 : vector<8x128xf32>
    %54 = math.exp %53 : vector<8x128xf32>
    %cst_12 = arith.constant 1.000000e+00 : f32
    %55 = vector.broadcast %cst_12 : f32 to vector<8x128xf32>
    %56 = arith.addf %55, %54 : vector<8x128xf32>
    %57 = arith.divf %55, %56 : vector<8x128xf32>
    %58 = math.tanh %52 : vector<8x128xf32>
    %59 = vector.extract_strided_slice %57 {offsets = [0, 0], sizes = [8, 32], strides = [1, 1]} : vector<8x128xf32> to vector<8x32xf32>
    %60 = vector.extract_strided_slice %57 {offsets = [0, 32], sizes = [8, 32], strides = [1, 1]} : vector<8x128xf32> to vector<8x32xf32>
    %61 = vector.extract_strided_slice %58 {offsets = [0, 64], sizes = [8, 32], strides = [1, 1]} : vector<8x128xf32> to vector<8x32xf32>
    %62 = vector.extract_strided_slice %57 {offsets = [0, 96], sizes = [8, 32], strides = [1, 1]} : vector<8x128xf32> to vector<8x32xf32>
    %63 = arith.mulf %60, %47 : vector<8x32xf32>
    %64 = arith.mulf %59, %61 : vector<8x32xf32>
    %65 = arith.addf %63, %64 : vector<8x32xf32>
    %66 = math.tanh %65 : vector<8x32xf32>
    %67 = arith.mulf %62, %66 : vector<8x32xf32>
    %68 = tpu.concatenate %67, %67 in 1 : vector<8x32xf32>, vector<8x32xf32> -> vector<8x64xf32>
    %69 = arith.mulf %68, %45 : vector<8x64xf32>
    %70 = arith.truncf %69 : vector<8x64xf32> to vector<8x64xbf16>
    %cst_13 = arith.constant dense<0.000000e+00> : vector<8x128xf32>
    %71 = tpu.matmul %70, %30, %cst_13 {dimension_numbers = #tpu.dot_dimension_numbers<[1], [0], [0], [1], [0, 0, 1, 1], [], []>} : vector<8x64xbf16>, vector<64x128xbf16>, vector<8x128xf32> -> vector<8x128xf32>
    %72 = arith.addf %11, %71 : vector<8x128xf32>
    %73 = arith.negf %72 : vector<8x128xf32>
    %74 = math.exp %73 : vector<8x128xf32>
    %cst_14 = arith.constant 1.000000e+00 : f32
    %75 = vector.broadcast %cst_14 : f32 to vector<8x128xf32>
    %76 = arith.addf %75, %74 : vector<8x128xf32>
    %77 = arith.divf %75, %76 : vector<8x128xf32>
    %78 = math.tanh %72 : vector<8x128xf32>
    %79 = vector.extract_strided_slice %77 {offsets = [0, 0], sizes = [8, 32], strides = [1, 1]} : vector<8x128xf32> to vector<8x32xf32>
    %80 = vector.extract_strided_slice %77 {offsets = [0, 32], sizes = [8, 32], strides = [1, 1]} : vector<8x128xf32> to vector<8x32xf32>
    %81 = vector.extract_strided_slice %78 {offsets = [0, 64], sizes = [8, 32], strides = [1, 1]} : vector<8x128xf32> to vector<8x32xf32>
    %82 = vector.extract_strided_slice %77 {offsets = [0, 96], sizes = [8, 32], strides = [1, 1]} : vector<8x128xf32> to vector<8x32xf32>
    %83 = arith.mulf %80, %65 : vector<8x32xf32>
    %84 = arith.mulf %79, %81 : vector<8x32xf32>
    %85 = arith.addf %83, %84 : vector<8x32xf32>
    %86 = math.tanh %85 : vector<8x32xf32>
    %87 = arith.mulf %82, %86 : vector<8x32xf32>
    %88 = tpu.concatenate %87, %87 in 1 : vector<8x32xf32>, vector<8x32xf32> -> vector<8x64xf32>
    %89 = arith.mulf %88, %45 : vector<8x64xf32>
    %90 = arith.truncf %89 : vector<8x64xf32> to vector<8x64xbf16>
    %cst_15 = arith.constant dense<0.000000e+00> : vector<8x128xf32>
    %91 = tpu.matmul %90, %30, %cst_15 {dimension_numbers = #tpu.dot_dimension_numbers<[1], [0], [0], [1], [0, 0, 1, 1], [], []>} : vector<8x64xbf16>, vector<64x128xbf16>, vector<8x128xf32> -> vector<8x128xf32>
    %92 = arith.addf %14, %91 : vector<8x128xf32>
    %93 = arith.negf %92 : vector<8x128xf32>
    %94 = math.exp %93 : vector<8x128xf32>
    %cst_16 = arith.constant 1.000000e+00 : f32
    %95 = vector.broadcast %cst_16 : f32 to vector<8x128xf32>
    %96 = arith.addf %95, %94 : vector<8x128xf32>
    %97 = arith.divf %95, %96 : vector<8x128xf32>
    %98 = math.tanh %92 : vector<8x128xf32>
    %99 = vector.extract_strided_slice %97 {offsets = [0, 0], sizes = [8, 32], strides = [1, 1]} : vector<8x128xf32> to vector<8x32xf32>
    %100 = vector.extract_strided_slice %97 {offsets = [0, 32], sizes = [8, 32], strides = [1, 1]} : vector<8x128xf32> to vector<8x32xf32>
    %101 = vector.extract_strided_slice %98 {offsets = [0, 64], sizes = [8, 32], strides = [1, 1]} : vector<8x128xf32> to vector<8x32xf32>
    %102 = vector.extract_strided_slice %97 {offsets = [0, 96], sizes = [8, 32], strides = [1, 1]} : vector<8x128xf32> to vector<8x32xf32>
    %103 = arith.mulf %100, %85 : vector<8x32xf32>
    %104 = arith.mulf %99, %101 : vector<8x32xf32>
    %105 = arith.addf %103, %104 : vector<8x32xf32>
    %106 = math.tanh %105 : vector<8x32xf32>
    %107 = arith.mulf %102, %106 : vector<8x32xf32>
    %108 = tpu.concatenate %107, %107 in 1 : vector<8x32xf32>, vector<8x32xf32> -> vector<8x64xf32>
    %109 = arith.mulf %108, %45 : vector<8x64xf32>
    %110 = arith.truncf %109 : vector<8x64xf32> to vector<8x64xbf16>
    %cst_17 = arith.constant dense<0.000000e+00> : vector<8x128xf32>
    %111 = tpu.matmul %110, %30, %cst_17 {dimension_numbers = #tpu.dot_dimension_numbers<[1], [0], [0], [1], [0, 0, 1, 1], [], []>} : vector<8x64xbf16>, vector<64x128xbf16>, vector<8x128xf32> -> vector<8x128xf32>
    %112 = arith.addf %17, %111 : vector<8x128xf32>
    %113 = arith.negf %112 : vector<8x128xf32>
    %114 = math.exp %113 : vector<8x128xf32>
    %cst_18 = arith.constant 1.000000e+00 : f32
    %115 = vector.broadcast %cst_18 : f32 to vector<8x128xf32>
    %116 = arith.addf %115, %114 : vector<8x128xf32>
    %117 = arith.divf %115, %116 : vector<8x128xf32>
    %118 = math.tanh %112 : vector<8x128xf32>
    %119 = vector.extract_strided_slice %117 {offsets = [0, 0], sizes = [8, 32], strides = [1, 1]} : vector<8x128xf32> to vector<8x32xf32>
    %120 = vector.extract_strided_slice %117 {offsets = [0, 32], sizes = [8, 32], strides = [1, 1]} : vector<8x128xf32> to vector<8x32xf32>
    %121 = vector.extract_strided_slice %118 {offsets = [0, 64], sizes = [8, 32], strides = [1, 1]} : vector<8x128xf32> to vector<8x32xf32>
    %122 = vector.extract_strided_slice %117 {offsets = [0, 96], sizes = [8, 32], strides = [1, 1]} : vector<8x128xf32> to vector<8x32xf32>
    %123 = arith.mulf %120, %105 : vector<8x32xf32>
    %124 = arith.mulf %119, %121 : vector<8x32xf32>
    %125 = arith.addf %123, %124 : vector<8x32xf32>
    %126 = math.tanh %125 : vector<8x32xf32>
    %127 = arith.mulf %122, %126 : vector<8x32xf32>
    %128 = tpu.concatenate %127, %127 in 1 : vector<8x32xf32>, vector<8x32xf32> -> vector<8x64xf32>
    %129 = arith.mulf %128, %45 : vector<8x64xf32>
    %130 = arith.truncf %129 : vector<8x64xf32> to vector<8x64xbf16>
    %cst_19 = arith.constant dense<0.000000e+00> : vector<8x128xf32>
    %131 = tpu.matmul %130, %30, %cst_19 {dimension_numbers = #tpu.dot_dimension_numbers<[1], [0], [0], [1], [0, 0, 1, 1], [], []>} : vector<8x64xbf16>, vector<64x128xbf16>, vector<8x128xf32> -> vector<8x128xf32>
    %132 = arith.addf %20, %131 : vector<8x128xf32>
    %133 = arith.negf %132 : vector<8x128xf32>
    %134 = math.exp %133 : vector<8x128xf32>
    %cst_20 = arith.constant 1.000000e+00 : f32
    %135 = vector.broadcast %cst_20 : f32 to vector<8x128xf32>
    %136 = arith.addf %135, %134 : vector<8x128xf32>
    %137 = arith.divf %135, %136 : vector<8x128xf32>
    %138 = math.tanh %132 : vector<8x128xf32>
    %139 = vector.extract_strided_slice %137 {offsets = [0, 0], sizes = [8, 32], strides = [1, 1]} : vector<8x128xf32> to vector<8x32xf32>
    %140 = vector.extract_strided_slice %137 {offsets = [0, 32], sizes = [8, 32], strides = [1, 1]} : vector<8x128xf32> to vector<8x32xf32>
    %141 = vector.extract_strided_slice %138 {offsets = [0, 64], sizes = [8, 32], strides = [1, 1]} : vector<8x128xf32> to vector<8x32xf32>
    %142 = vector.extract_strided_slice %137 {offsets = [0, 96], sizes = [8, 32], strides = [1, 1]} : vector<8x128xf32> to vector<8x32xf32>
    %143 = arith.mulf %140, %125 : vector<8x32xf32>
    %144 = arith.mulf %139, %141 : vector<8x32xf32>
    %145 = arith.addf %143, %144 : vector<8x32xf32>
    %146 = math.tanh %145 : vector<8x32xf32>
    %147 = arith.mulf %142, %146 : vector<8x32xf32>
    %148 = tpu.concatenate %147, %147 in 1 : vector<8x32xf32>, vector<8x32xf32> -> vector<8x64xf32>
    %149 = arith.mulf %148, %45 : vector<8x64xf32>
    %150 = arith.truncf %149 : vector<8x64xf32> to vector<8x64xbf16>
    %cst_21 = arith.constant dense<0.000000e+00> : vector<8x128xf32>
    %151 = tpu.matmul %150, %30, %cst_21 {dimension_numbers = #tpu.dot_dimension_numbers<[1], [0], [0], [1], [0, 0, 1, 1], [], []>} : vector<8x64xbf16>, vector<64x128xbf16>, vector<8x128xf32> -> vector<8x128xf32>
    %152 = arith.addf %23, %151 : vector<8x128xf32>
    %153 = arith.negf %152 : vector<8x128xf32>
    %154 = math.exp %153 : vector<8x128xf32>
    %cst_22 = arith.constant 1.000000e+00 : f32
    %155 = vector.broadcast %cst_22 : f32 to vector<8x128xf32>
    %156 = arith.addf %155, %154 : vector<8x128xf32>
    %157 = arith.divf %155, %156 : vector<8x128xf32>
    %158 = math.tanh %152 : vector<8x128xf32>
    %159 = vector.extract_strided_slice %157 {offsets = [0, 0], sizes = [8, 32], strides = [1, 1]} : vector<8x128xf32> to vector<8x32xf32>
    %160 = vector.extract_strided_slice %157 {offsets = [0, 32], sizes = [8, 32], strides = [1, 1]} : vector<8x128xf32> to vector<8x32xf32>
    %161 = vector.extract_strided_slice %158 {offsets = [0, 64], sizes = [8, 32], strides = [1, 1]} : vector<8x128xf32> to vector<8x32xf32>
    %162 = vector.extract_strided_slice %157 {offsets = [0, 96], sizes = [8, 32], strides = [1, 1]} : vector<8x128xf32> to vector<8x32xf32>
    %163 = arith.mulf %160, %145 : vector<8x32xf32>
    %164 = arith.mulf %159, %161 : vector<8x32xf32>
    %165 = arith.addf %163, %164 : vector<8x32xf32>
    %166 = math.tanh %165 : vector<8x32xf32>
    %167 = arith.mulf %162, %166 : vector<8x32xf32>
    %168 = tpu.concatenate %167, %167 in 1 : vector<8x32xf32>, vector<8x32xf32> -> vector<8x64xf32>
    %169 = arith.mulf %168, %45 : vector<8x64xf32>
    %170 = arith.truncf %169 : vector<8x64xf32> to vector<8x64xbf16>
    %cst_23 = arith.constant dense<0.000000e+00> : vector<8x128xf32>
    %171 = tpu.matmul %170, %30, %cst_23 {dimension_numbers = #tpu.dot_dimension_numbers<[1], [0], [0], [1], [0, 0, 1, 1], [], []>} : vector<8x64xbf16>, vector<64x128xbf16>, vector<8x128xf32> -> vector<8x128xf32>
    %172 = arith.addf %26, %171 : vector<8x128xf32>
    %173 = arith.negf %172 : vector<8x128xf32>
    %174 = math.exp %173 : vector<8x128xf32>
    %cst_24 = arith.constant 1.000000e+00 : f32
    %175 = vector.broadcast %cst_24 : f32 to vector<8x128xf32>
    %176 = arith.addf %175, %174 : vector<8x128xf32>
    %177 = arith.divf %175, %176 : vector<8x128xf32>
    %178 = math.tanh %172 : vector<8x128xf32>
    %179 = vector.extract_strided_slice %177 {offsets = [0, 0], sizes = [8, 32], strides = [1, 1]} : vector<8x128xf32> to vector<8x32xf32>
    %180 = vector.extract_strided_slice %177 {offsets = [0, 32], sizes = [8, 32], strides = [1, 1]} : vector<8x128xf32> to vector<8x32xf32>
    %181 = vector.extract_strided_slice %178 {offsets = [0, 64], sizes = [8, 32], strides = [1, 1]} : vector<8x128xf32> to vector<8x32xf32>
    %182 = vector.extract_strided_slice %177 {offsets = [0, 96], sizes = [8, 32], strides = [1, 1]} : vector<8x128xf32> to vector<8x32xf32>
    %183 = arith.mulf %180, %165 : vector<8x32xf32>
    %184 = arith.mulf %179, %181 : vector<8x32xf32>
    %185 = arith.addf %183, %184 : vector<8x32xf32>
    %186 = math.tanh %185 : vector<8x32xf32>
    %187 = arith.mulf %182, %186 : vector<8x32xf32>
    %188 = tpu.concatenate %187, %187 in 1 : vector<8x32xf32>, vector<8x32xf32> -> vector<8x64xf32>
    %189 = arith.mulf %188, %45 : vector<8x64xf32>
    %190 = arith.truncf %189 : vector<8x64xf32> to vector<8x64xbf16>
    %cst_25 = arith.constant dense<0.000000e+00> : vector<8x128xf32>
    %191 = tpu.matmul %190, %30, %cst_25 {dimension_numbers = #tpu.dot_dimension_numbers<[1], [0], [0], [1], [0, 0, 1, 1], [], []>} : vector<8x64xbf16>, vector<64x128xbf16>, vector<8x128xf32> -> vector<8x128xf32>
    %192 = arith.addf %29, %191 : vector<8x128xf32>
    %193 = arith.negf %192 : vector<8x128xf32>
    %194 = math.exp %193 : vector<8x128xf32>
    %cst_26 = arith.constant 1.000000e+00 : f32
    %195 = vector.broadcast %cst_26 : f32 to vector<8x128xf32>
    %196 = arith.addf %195, %194 : vector<8x128xf32>
    %197 = arith.divf %195, %196 : vector<8x128xf32>
    %198 = math.tanh %192 : vector<8x128xf32>
    %199 = vector.extract_strided_slice %197 {offsets = [0, 0], sizes = [8, 32], strides = [1, 1]} : vector<8x128xf32> to vector<8x32xf32>
    %200 = vector.extract_strided_slice %197 {offsets = [0, 32], sizes = [8, 32], strides = [1, 1]} : vector<8x128xf32> to vector<8x32xf32>
    %201 = vector.extract_strided_slice %198 {offsets = [0, 64], sizes = [8, 32], strides = [1, 1]} : vector<8x128xf32> to vector<8x32xf32>
    %202 = vector.extract_strided_slice %197 {offsets = [0, 96], sizes = [8, 32], strides = [1, 1]} : vector<8x128xf32> to vector<8x32xf32>
    %203 = arith.mulf %200, %185 : vector<8x32xf32>
    %204 = arith.mulf %199, %201 : vector<8x32xf32>
    %205 = arith.addf %203, %204 : vector<8x32xf32>
    %206 = math.tanh %205 : vector<8x32xf32>
    %207 = arith.mulf %202, %206 : vector<8x32xf32>
    %208 = vector.extract_strided_slice %67 {offsets = [0, 0], sizes = [4, 32], strides = [1, 1]} : vector<8x32xf32> to vector<4x32xf32>
    %209 = vector.extract_strided_slice %207 {offsets = [4, 0], sizes = [4, 32], strides = [1, 1]} : vector<8x32xf32> to vector<4x32xf32>
    %210 = tpu.concatenate %208, %209 in 1 : vector<4x32xf32>, vector<4x32xf32> -> vector<4x64xf32>
    %211 = vector.extract_strided_slice %87 {offsets = [0, 0], sizes = [4, 32], strides = [1, 1]} : vector<8x32xf32> to vector<4x32xf32>
    %212 = vector.extract_strided_slice %187 {offsets = [4, 0], sizes = [4, 32], strides = [1, 1]} : vector<8x32xf32> to vector<4x32xf32>
    %213 = tpu.concatenate %211, %212 in 1 : vector<4x32xf32>, vector<4x32xf32> -> vector<4x64xf32>
    %214 = vector.extract_strided_slice %107 {offsets = [0, 0], sizes = [4, 32], strides = [1, 1]} : vector<8x32xf32> to vector<4x32xf32>
    %215 = vector.extract_strided_slice %167 {offsets = [4, 0], sizes = [4, 32], strides = [1, 1]} : vector<8x32xf32> to vector<4x32xf32>
    %216 = tpu.concatenate %214, %215 in 1 : vector<4x32xf32>, vector<4x32xf32> -> vector<4x64xf32>
    %217 = vector.extract_strided_slice %127 {offsets = [0, 0], sizes = [4, 32], strides = [1, 1]} : vector<8x32xf32> to vector<4x32xf32>
    %218 = vector.extract_strided_slice %147 {offsets = [4, 0], sizes = [4, 32], strides = [1, 1]} : vector<8x32xf32> to vector<4x32xf32>
    %219 = tpu.concatenate %217, %218 in 1 : vector<4x32xf32>, vector<4x32xf32> -> vector<4x64xf32>
    %220 = vector.extract_strided_slice %147 {offsets = [0, 0], sizes = [4, 32], strides = [1, 1]} : vector<8x32xf32> to vector<4x32xf32>
    %221 = vector.extract_strided_slice %127 {offsets = [4, 0], sizes = [4, 32], strides = [1, 1]} : vector<8x32xf32> to vector<4x32xf32>
    %222 = tpu.concatenate %220, %221 in 1 : vector<4x32xf32>, vector<4x32xf32> -> vector<4x64xf32>
    %223 = vector.extract_strided_slice %167 {offsets = [0, 0], sizes = [4, 32], strides = [1, 1]} : vector<8x32xf32> to vector<4x32xf32>
    %224 = vector.extract_strided_slice %107 {offsets = [4, 0], sizes = [4, 32], strides = [1, 1]} : vector<8x32xf32> to vector<4x32xf32>
    %225 = tpu.concatenate %223, %224 in 1 : vector<4x32xf32>, vector<4x32xf32> -> vector<4x64xf32>
    %226 = vector.extract_strided_slice %187 {offsets = [0, 0], sizes = [4, 32], strides = [1, 1]} : vector<8x32xf32> to vector<4x32xf32>
    %227 = vector.extract_strided_slice %87 {offsets = [4, 0], sizes = [4, 32], strides = [1, 1]} : vector<8x32xf32> to vector<4x32xf32>
    %228 = tpu.concatenate %226, %227 in 1 : vector<4x32xf32>, vector<4x32xf32> -> vector<4x64xf32>
    %229 = vector.extract_strided_slice %207 {offsets = [0, 0], sizes = [4, 32], strides = [1, 1]} : vector<8x32xf32> to vector<4x32xf32>
    %230 = vector.extract_strided_slice %67 {offsets = [4, 0], sizes = [4, 32], strides = [1, 1]} : vector<8x32xf32> to vector<4x32xf32>
    %231 = tpu.concatenate %229, %230 in 1 : vector<4x32xf32>, vector<4x32xf32> -> vector<4x64xf32>
    %232 = tpu.concatenate %210, %213, %216, %219, %222, %225, %228, %231 in 0 : vector<4x64xf32>, vector<4x64xf32>, vector<4x64xf32>, vector<4x64xf32>, vector<4x64xf32>, vector<4x64xf32>, vector<4x64xf32>, vector<4x64xf32> -> vector<32x64xf32>
    %c0_27 = arith.constant 0 : index
    %c0_28 = arith.constant 0 : index
    %233 = vector.load %arg8[%c0_27, %c0_28] : memref<32x64xf32, #tpu.memory_space<vmem>>, vector<32x64xf32>
    tpu.vector_store %arg8[%c0_27, %c0_28], %232 {strides = array<i32>} : memref<32x64xf32, #tpu.memory_space<vmem>>, vector<32x64xf32>,
    %234 = arith.truncf %207 : vector<8x32xf32> to vector<8x32xbf16>
    %c0_29 = arith.constant 0 : index
    %c0_30 = arith.constant 0 : index
    %235 = vector.load %arg4[%c0_29, %c0_30] : memref<32x32xbf16, #tpu.memory_space<vmem>>, vector<32x32xbf16>
    %cst_31 = arith.constant dense<0.000000e+00> : vector<8x32xf32>
    %236 = tpu.matmul %234, %235, %cst_31 {dimension_numbers = #tpu.dot_dimension_numbers<[1], [0], [0], [1], [0, 0, 1, 1], [], []>} : vector<8x32xbf16>, vector<32x32xbf16>, vector<8x32xf32> -> vector<8x32xf32>
    %c0_32 = arith.constant 0 : index
    %c0_33 = arith.constant 0 : index
    %237 = vector.load %arg5[%c0_32, %c0_33] : memref<1x32xf32, #tpu.memory_space<vmem>>, vector<1x32xf32>
    %238 = vector.broadcast %237 : vector<1x32xf32> to vector<8x32xf32>
    %239 = arith.addf %236, %238 : vector<8x32xf32>
    %cst_34 = arith.constant 0.000000e+00 : f32
    %240 = vector.broadcast %cst_34 : f32 to vector<8x32xf32>
    %241 = arith.maximumf %239, %240 : vector<8x32xf32>
    %242 = arith.truncf %241 : vector<8x32xf32> to vector<8x32xbf16>
    %c0_35 = arith.constant 0 : index
    %c0_36 = arith.constant 0 : index
    %243 = vector.load %arg6[%c0_35, %c0_36] : memref<32x32xbf16, #tpu.memory_space<vmem>>, vector<32x32xbf16>
    %cst_37 = arith.constant dense<0.000000e+00> : vector<8x32xf32>
    %244 = tpu.matmul %242, %243, %cst_37 {dimension_numbers = #tpu.dot_dimension_numbers<[1], [0], [0], [1], [0, 0, 1, 1], [], []>} : vector<8x32xbf16>, vector<32x32xbf16>, vector<8x32xf32> -> vector<8x32xf32>
    %c0_38 = arith.constant 0 : index
    %c0_39 = arith.constant 0 : index
    %245 = vector.load %arg7[%c0_38, %c0_39] : memref<1x32xf32, #tpu.memory_space<vmem>>, vector<1x32xf32>
    %246 = vector.broadcast %245 : vector<1x32xf32> to vector<8x32xf32>
    %247 = arith.addf %244, %246 : vector<8x32xf32>
    %248 = math.tanh %247 : vector<8x32xf32>
    %c0_40 = arith.constant 0 : index
    %c0_41 = arith.constant 0 : index
    %249 = vector.load %arg9[%c0_40, %c0_41] : memref<8x32xf32, #tpu.memory_space<vmem>>, vector<8x32xf32>
    tpu.vector_store %arg9[%c0_40, %c0_41], %248 {strides = array<i32>} : memref<8x32xf32, #tpu.memory_space<vmem>>, vector<8x32xf32>,
    return
  }
}

</mosaic_0001>

<llo_original>
// kernel: tpu_custom_call.1
$region0: #{tpu_custom_call.1}
  #allocation0 [shape = 'u32[]', space=smem, size = 0x4, offset = 0x4, fixed_abs, tag = 'smem constant byte address 0x4 - core index']
  #allocation1 [shape = 'u32[144,128]{1,0:T(1,128)}', space=vmem, size = 0x12000, scoped, tag = 'internal scratch']
  %s0 = inlined_call_operand.vmem [shape: bf16[32,16], index: 0, kind: input, shape index: {}]
  %s1 = inlined_call_operand.vmem [shape: bf16[16,256], index: 1, kind: input, shape index: {}]
  %s2 = inlined_call_operand.hbm [shape: bf16[64,128], index: 2, kind: input, shape index: {}]
  %s3 = inlined_call_operand.hbm [shape: f32[1,256], index: 3, kind: input, shape index: {}]
  %s4 = inlined_call_operand.hbm [shape: bf16[32,32], index: 4, kind: input, shape index: {}]
  %s5 = inlined_call_operand.vmem [shape: f32[1,32], index: 5, kind: input, shape index: {}]
  %s6 = inlined_call_operand.vmem [shape: bf16[32,32], index: 6, kind: input, shape index: {}]
  %s7 = inlined_call_operand.vmem [shape: f32[1,32], index: 7, kind: input, shape index: {}]
  %s8 = inlined_call_operand.hbm [shape: f32[32,64], index: 8, kind: output, shape index: {0}]
  %s9 = inlined_call_operand.hbm [shape: f32[8,32], index: 9, kind: output, shape index: {1}]
  %10 = xla_tuple %s8, %s9
  %s11 = sld [smem:[#allocation0]]
  $region62: #{tpu_custom_call.1} parent=0
    _
  %s13 = ssub.s32 1, %s11
  %s14 = scalar_select 0, %s13, %s11
  $region1: #{tpu_custom_call.1} parent=0
    #allocation2 [shape = 'u8[16384]{0}', space=vmem, size = 0x4000, scoped, tag = 'input window, operand 2, single buffered']
    #allocation3 [shape = 's32[1]{0}', space=sflag, size = 0x4, scoped, tag = 'scoped memory for tpu_custom_call.1']
    #allocation4 [shape = 's32[1]{0}', space=sflag, size = 0x4, scoped, tag = 'scoped memory for tpu_custom_call.1']
    #allocation5 [shape = 'u8[1024]{0}', space=vmem, size = 0x400, scoped, tag = 'input window, operand 3, single buffered']
    #allocation6 [shape = 's32[1]{0}', space=sflag, size = 0x4, scoped, tag = 'scoped memory for tpu_custom_call.1']
    #allocation7 [shape = 'u8[8192]{0}', space=vmem, size = 0x2000, scoped, tag = 'input window, operand 4, single buffered']
    #allocation8 [shape = 'u8[16384]{0}', space=vmem, size = 0x4000, scoped, tag = 'output window, operand 0, single buffered']
    #allocation9 [shape = 'u8[4096]{0}', space=vmem, size = 0x1000, scoped, tag = 'output window, operand 1, single buffered']
    #allocation10 [shape = 's32[1]{0}', space=sflag, size = 0x4, scoped, tag = 'scoped memory for tpu_custom_call.1']
    %15 = vsyncpa [#allocation3], 0
    %16 = vsyncpa [#allocation6], 0
    %17 = vsyncpa [#allocation4], 0
    %18 = vsyncpa [#allocation10], 0
    // Predicated region
    $region2: #{tpu_custom_call.1} parent=1 // pred_check
      _
    $region3: #{tpu_custom_call.1} parent=1 // pred_check_branch
      %20 = sbr.rel (0) target = $region5
    $region4: #{tpu_custom_call.1} parent=1 // pred_region
      _
    $region5: #{tpu_custom_call.1} parent=1 // pred_fallthru
      _
    // Predicated region
    $region6: #{tpu_custom_call.1} parent=1 // pred_check
      _
    $region7: #{tpu_custom_call.1} parent=1 // pred_check_branch
      %22 = sbr.rel (0) target = $region9
    $region8: #{tpu_custom_call.1} parent=1 // pred_region
      _
    $region9: #{tpu_custom_call.1} parent=1 // pred_fallthru
      _
    // Predicated region
    $region10: #{tpu_custom_call.1} parent=1 // pred_check
      _
    $region11: #{tpu_custom_call.1} parent=1 // pred_check_branch
      %24 = sbr.rel (0) target = $region13
    $region12: #{tpu_custom_call.1} parent=1 // pred_region
      %s26 = ssub.s32 512, 512
      %27 = vsyncadd [#allocation3], %s26
      %s28 = sshll.u32 [#allocation2], 4
      %s29 = int_to_ptr.vmem [resolvable:$true] %s28
      %34 = dma.hbm_to_vmem [thread:$0]  %s2, 512, %s29, [#allocation3], 64, 64, 4
    $region13: #{tpu_custom_call.1} parent=1 // pred_fallthru
      _
    // Predicated region
    $region14: #{tpu_custom_call.1} parent=1 // pred_check
      _
    $region15: #{tpu_custom_call.1} parent=1 // pred_check_branch
      %36 = sbr.rel (0) target = $region17
    $region16: #{tpu_custom_call.1} parent=1 // pred_region
      %s38 = ssub.s32 32, 32
      %39 = vsyncadd [#allocation6], %s38
      %s41 = sshll.u32 [#allocation5], 4
      %s42 = int_to_ptr.vmem [resolvable:$true] %s41
      %44 = dma.hbm_to_vmem [thread:$0]  %s3, 32, %s42, [#allocation6]
    $region17: #{tpu_custom_call.1} parent=1 // pred_fallthru
      _
    // Predicated region
    $region18: #{tpu_custom_call.1} parent=1 // pred_check
      _
    $region19: #{tpu_custom_call.1} parent=1 // pred_check_branch
      %46 = sbr.rel (0) target = $region21
    $region20: #{tpu_custom_call.1} parent=1 // pred_region
      %s48 = ssub.s32 256, 256
      %49 = vsyncadd [#allocation6], %s48
      %s50 = sshll.u32 [#allocation7], 4
      %s51 = int_to_ptr.vmem [resolvable:$true] %s50
      %56 = dma.hbm_to_vmem [thread:$0]  %s4, 256, %s51, [#allocation6], 64, 64, 4
    $region21: #{tpu_custom_call.1} parent=1 // pred_fallthru
      _
    // Predicated region
    $region22: #{tpu_custom_call.1} parent=1 // pred_check
      _
    $region23: #{tpu_custom_call.1} parent=1 // pred_check_branch
      %58 = sbr.rel (0) target = $region25
    $region24: #{tpu_custom_call.1} parent=1 // pred_region
      _
    $region25: #{tpu_custom_call.1} parent=1 // pred_fallthru
      _
    // Predicated region
    $region26: #{tpu_custom_call.1} parent=1 // pred_check
      _
    $region27: #{tpu_custom_call.1} parent=1 // pred_check_branch
      %60 = sbr.rel (0) target = $region29
    $region28: #{tpu_custom_call.1} parent=1 // pred_region
      _
    $region29: #{tpu_custom_call.1} parent=1 // pred_fallthru
      _
    // Predicated region
    $region30: #{tpu_custom_call.1} parent=1 // pred_check
      _
    $region31: #{tpu_custom_call.1} parent=1 // pred_check_branch
      %62 = sbr.rel (0) target = $region33
    $region32: #{tpu_custom_call.1} parent=1 // pred_region
      _
    $region33: #{tpu_custom_call.1} parent=1 // pred_fallthru
      _
    // Predicated region
    $region34: #{tpu_custom_call.1} parent=1 // pred_check
      _
    $region35: #{tpu_custom_call.1} parent=1 // pred_check_branch
      %64 = sbr.rel (0) target = $region37
    $region36: #{tpu_custom_call.1} parent=1 // pred_region
      %65 = dma.done [#allocation3], 512
    $region37: #{tpu_custom_call.1} parent=1 // pred_fallthru
      _
    // Predicated region
    $region38: #{tpu_custom_call.1} parent=1 // pred_check
      _
    $region39: #{tpu_custom_call.1} parent=1 // pred_check_branch
      %67 = sbr.rel (0) target = $region41
    $region40: #{tpu_custom_call.1} parent=1 // pred_region
      %68 = dma.done [#allocation6], 32
    $region41: #{tpu_custom_call.1} parent=1 // pred_fallthru
      _
    // Predicated region
    $region42: #{tpu_custom_call.1} parent=1 // pred_check
      _
    $region43: #{tpu_custom_call.1} parent=1 // pred_check_branch
      %70 = sbr.rel (0) target = $region45
    $region44: #{tpu_custom_call.1} parent=1 // pred_region
      %71 = dma.done [#allocation6], 256
    $region45: #{tpu_custom_call.1} parent=1 // pred_fallthru
      _
    %v73 = vld [vmem:[%s0] sm:$0xf]
    %v74 = vld [vmem:[%s0 + $0x4] sm:$0xf]
    %v75 = vld [vmem:[%s0 + $0x8] sm:$0xf]
    %v76 = vld [vmem:[%s0 + $0xc] sm:$0xf]
    %v77 = vld [vmem:[%s1] sm:$0xff]
    %v78 = vld [vmem:[%s1 + $0x8] sm:$0xff]
    %v79 = vld [vmem:[#allocation5] sm:$0x3]
    %v81 = vlaneseq
    %v82 = vshrl.u32 %v81, 7
    %v83 = vsub.s32 0, %v82
    %v84 = vrot.slane %v79, %v83
    %v85 = vlaneseq
    %v86 = vshrl.u32 %v85, 7
    %v87 = vsub.s32 1, %v86
    %v88 = vrot.slane %v79, %v87
    %v95 = vunpack.c.l.b16 %v73
    %v96 = vunpack.c.l.b16 %v74
    %v97 = vunpack.c.l.b16 %v75
    %v98 = vunpack.c.l.b16 %v76
    %v99 = vpack.c.b16 %v96, %v95
    %v100 = vpack.c.b16 %v98, %v97
    %v103 = vunpack.c.l.b16 %v77
    %v104 = vunpack.c.h.b16 %v77
    %v105 = vunpack.c.l.b16 %v78
    %v106 = vunpack.c.h.b16 %v78
    %v107 = vpack.c.b16 %v105, %v103
    %v108 = vpack.c.b16 %v106, %v104
    %vm111 = vcmask 130048
    %v113 = vsel %vm111, %v99, 0
    %v116 = vsel %vm111, %v100, 0
    %118 = vmatprep.subr.bf16.mxu0 0
    %119 = vmatpush1.bf16.msra.mxu0 0
    %120 = vmatprep.subr.bf16.mxu0 0
    %121 = vmatpush1.bf16.msra.mxu0 0
    %122 = vmatprep.subr.bf16.mxu0 0
    %123 = vmatpush1.bf16.msra.mxu0 0
    %124 = vmatprep.subr.bf16.mxu0 0
    %125 = vmatpush1.bf16.msra.mxu0 0
    %126 = vmatprep.subr.bf16.mxu0 0
    %127 = vmatpush1.bf16.msra.mxu0 0
    %128 = vmatprep.subr.bf16.mxu0 0
    %129 = vmatpush1.bf16.msra.mxu0 0
    %130 = vmatprep.subr.bf16.mxu0 0
    %131 = vmatpush1.bf16.msra.mxu0 0
    %132 = vmatprep.subr.bf16.mxu0 %v108
    %133 = vmatpush1.bf16.msra.mxu0 %v107
    %134 = vmatprep.subr.bf16.mxu0 0
    %135 = vmatpush2.bf16.msra.mxu0 0
    %136 = vmatprep.subr.bf16.mxu0 0
    %137 = vmatpush2.bf16.msra.mxu0 0
    %138 = vmatprep.subr.bf16.mxu0 0
    %139 = vmatpush2.bf16.msra.mxu0 0
    %140 = vmatprep.subr.bf16.mxu0 0
    %141 = vmatpush2.bf16.msra.mxu0 0
    %142 = vmatprep.subr.bf16.mxu0 0
    %143 = vmatpush2.bf16.msra.mxu0 0
    %144 = vmatprep.subr.bf16.mxu0 0
    %145 = vmatpush2.bf16.msra.mxu0 0
    %146 = vmatprep.subr.bf16.mxu0 0
    %147 = vmatpush2.bf16.msra.mxu0 0
    %148 = vmatprep.subr.bf16.mxu0 0
    %149 = vmatpush2.bf16.msra.mxu0 0
    %150 = vmatprep.mubr.bf16.mxu0 0
    %151 = vmatmul.mubr.bf16.gmra.mxu0 %v113
    %v152 = vpop.f32.mrf.mxu0
    %v153 = vadd.f32 %v84, %v152
    %v154 = vpop.f32.mrf.mxu0
    %v155 = vadd.f32 %v88, %v154
    %v156 = vpop.f32.mrf.mxu0
    %v157 = vadd.f32 %v84, %v156
    %v158 = vpop.f32.mrf.mxu0
    %v159 = vadd.f32 %v88, %v158
    %160 = vmatprep.mubr.bf16.mxu0 0
    %161 = vmatmul.mubr.bf16.gmra.mxu0 %v116
    %v162 = vpop.f32.mrf.mxu0
    %v163 = vadd.f32 %v84, %v162
    %v164 = vpop.f32.mrf.mxu0
    %v165 = vadd.f32 %v88, %v164
    %v166 = vpop.f32.mrf.mxu0
    %v167 = vadd.f32 %v84, %v166
    %v168 = vpop.f32.mrf.mxu0
    %v169 = vadd.f32 %v88, %v168
    %170 = vdwg.mxu0
    %vm171 = vcmask 1043456
    %v172 = vsel %vm171, %v153, %v169
    %v174 = vrot.slane %v153, 4
    %v177 = vrot.slane %v169, 4
    %v179 = vsel %vm171, %v174, %v177
    %v180 = vsel %vm171, %v157, %v165
    %v182 = vrot.slane %v157, 4
    %v185 = vrot.slane %v165, 4
    %v187 = vsel %vm171, %v182, %v185
    %v188 = vsel %vm171, %v163, %v159
    %v190 = vrot.slane %v163, 4
    %v193 = vrot.slane %v159, 4
    %v195 = vsel %vm171, %v190, %v193
    %v196 = vsel %vm171, %v167, %v155
    %v198 = vrot.slane %v167, 4
    %v201 = vrot.slane %v155, 4
    %v203 = vsel %vm171, %v198, %v201
    %v204 = vld [vmem:[#allocation2] sm:$0xf]
    %v205 = vld [vmem:[#allocation2 + $0x4] sm:$0xf]
    %v206 = vld [vmem:[#allocation2 + $0x8] sm:$0xf]
    %v207 = vld [vmem:[#allocation2 + $0xc] sm:$0xf]
    %v208 = vld [vmem:[#allocation2 + $0x10] sm:$0xf]
    %v209 = vld [vmem:[#allocation2 + $0x14] sm:$0xf]
    %v210 = vld [vmem:[#allocation2 + $0x18] sm:$0xf]
    %v211 = vld [vmem:[#allocation2 + $0x1c] sm:$0xf]
    %v212 = vlaneseq
    %v213 = vshrl.u32 %v212, 7
    %v214 = vlaneseq
    %v215 = vand.u32 %v214, 127
    %vm216 = vcmp.lt.s32.totalorder %v213, 4
    %vm217 = vcmp.lt.s32.totalorder %v215, 32
    %vm218 = vmand %vm216, %vm217
    %vm219 = vcmp.ge.s32.totalorder %v213, 4
    %vm220 = vcmp.ge.s32.totalorder %v215, 32
    %vm221 = vmand %vm219, %vm220
    %vm222 = vmor %vm218, %vm221
    %v223 = vsel %vm222, 1, 0
    %v224 = vcvt.s32.f32 %v223
    %v225 = vmul.f32 %v224, 0.0
    %v226 = vpack.c.bf16 %v225, %v225
    %v235 = vunpack.c.l.b16 %v204
    %v236 = vunpack.c.l.b16 %v205
    %v237 = vunpack.c.l.b16 %v206
    %v238 = vunpack.c.l.b16 %v207
    %v239 = vunpack.c.l.b16 %v208
    %v240 = vunpack.c.l.b16 %v209
    %v241 = vunpack.c.l.b16 %v210
    %v242 = vunpack.c.l.b16 %v211
    %v243 = vpack.c.b16 %v236, %v235
    %v244 = vpack.c.b16 %v238, %v237
    %v245 = vpack.c.b16 %v240, %v239
    %v246 = vpack.c.b16 %v242, %v241
    %vm251 = vcmask 523264
    %v253 = vsel %vm251, %v226, 0
    %255 = vmatprep.subr.bf16.mxu0 0
    %256 = vmatpush1.bf16.msra.mxu0 0
    %257 = vmatprep.subr.bf16.mxu0 0
    %258 = vmatpush1.bf16.msra.mxu0 0
    %259 = vmatprep.subr.bf16.mxu0 0
    %260 = vmatpush1.bf16.msra.mxu0 0
    %261 = vmatprep.subr.bf16.mxu0 0
    %262 = vmatpush1.bf16.msra.mxu0 0
    %263 = vmatprep.subr.bf16.mxu0 0
    %264 = vmatpush1.bf16.msra.mxu0 %v246
    %265 = vmatprep.subr.bf16.mxu0 0
    %266 = vmatpush1.bf16.msra.mxu0 %v245
    %267 = vmatprep.subr.bf16.mxu0 0
    %268 = vmatpush1.bf16.msra.mxu0 %v244
    %269 = vmatprep.subr.bf16.mxu0 0
    %270 = vmatpush1.bf16.msra.mxu0 %v243
    %271 = vmatprep.subr.bf16.mxu0 0
    %272 = vmatpush2.bf16.msra.mxu0 0
    %273 = vmatprep.subr.bf16.mxu0 0
    %274 = vmatpush2.bf16.msra.mxu0 0
    %275 = vmatprep.subr.bf16.mxu0 0
    %276 = vmatpush2.bf16.msra.mxu0 0
    %277 = vmatprep.subr.bf16.mxu0 0
    %278 = vmatpush2.bf16.msra.mxu0 0
    %279 = vmatprep.subr.bf16.mxu0 0
    %280 = vmatpush2.bf16.msra.mxu0 0
    %281 = vmatprep.subr.bf16.mxu0 0
    %282 = vmatpush2.bf16.msra.mxu0 0
    %283 = vmatprep.subr.bf16.mxu0 0
    %284 = vmatpush2.bf16.msra.mxu0 0
    %285 = vmatprep.subr.bf16.mxu0 0
    %286 = vmatpush2.bf16.msra.mxu0 0
    %287 = vmatprep.mubr.bf16.mxu0 0
    %288 = vmatmul.mubr.bf16.gmra.mxu0 %v253
    %v289 = vpop.f32.mrf.mxu0
    %v290 = vadd.f32 0.0, %v289
    %v291 = vpop.f32.mrf.mxu0
    %v292 = vpop.f32.mrf.mxu0
    %v293 = vpop.f32.mrf.mxu0
    %294 = vdwg.mxu0
    %v295 = vadd.f32 %v172, %v290
    %v296 = vxor.u32 %v295, 2147483648
    %v297 = vmul.f32 %v296, 1.442695
    %v298 = vpow.pop %v297
    %v299 = vadd.f32 %v298, 1.0
    %v300 = vrcp.pop %v299
    %v301 = vmul.f32 1.0, %v300
    %v302 = vtanh.pop %v295
    %v303 = vmul.f32 %v301, 0.0
    %305 = vrot.lane.b32.xlu0 %v302, 64
    %v306 = vpop.permute.xlu0 %305
    %v308 = vmul.f32 %v301, %v306
    %310 = vrot.lane.b32.xlu0 %v308, 32
    %v311 = vpop.permute.xlu0 %310
    %v313 = vadd.f32 %v303, %v311
    %v314 = vtanh.pop %v313
    %316 = vrot.lane.b32.xlu0 %v314, 64
    %v317 = vpop.permute.xlu0 %316
    %v319 = vmul.f32 %v301, %v317
    %321 = vrot.lane.b32.xlu0 %v319, 32
    %v322 = vpop.permute.xlu0 %321
    %324 = vrot.lane.b32.xlu0 %v319, 64
    %v325 = vpop.permute.xlu0 %324
    %vm327 = vcmask 261120
    %v328 = vsel %vm327, %v322, %v325
    %v329 = vmul.f32 %v328, %v224
    %v330 = vpack.c.bf16 %v329, %v329
    %v332 = vsel %vm251, %v330, 0
    %334 = vmatprep.subr.bf16.mxu0 0
    %335 = vmatpush1.bf16.msra.mxu0 0
    %336 = vmatprep.subr.bf16.mxu0 0
    %337 = vmatpush1.bf16.msra.mxu0 0
    %338 = vmatprep.subr.bf16.mxu0 0
    %339 = vmatpush1.bf16.msra.mxu0 0
    %340 = vmatprep.subr.bf16.mxu0 0
    %341 = vmatpush1.bf16.msra.mxu0 0
    %342 = vmatprep.subr.bf16.mxu0 0
    %343 = vmatpush1.bf16.msra.mxu0 %v246
    %344 = vmatprep.subr.bf16.mxu0 0
    %345 = vmatpush1.bf16.msra.mxu0 %v245
    %346 = vmatprep.subr.bf16.mxu0 0
    %347 = vmatpush1.bf16.msra.mxu0 %v244
    %348 = vmatprep.subr.bf16.mxu0 0
    %349 = vmatpush1.bf16.msra.mxu0 %v243
    %350 = vmatprep.subr.bf16.mxu0 0
    %351 = vmatpush2.bf16.msra.mxu0 0
    %352 = vmatprep.subr.bf16.mxu0 0
    %353 = vmatpush2.bf16.msra.mxu0 0
    %354 = vmatprep.subr.bf16.mxu0 0
    %355 = vmatpush2.bf16.msra.mxu0 0
    %356 = vmatprep.subr.bf16.mxu0 0
    %357 = vmatpush2.bf16.msra.mxu0 0
    %358 = vmatprep.subr.bf16.mxu0 0
    %359 = vmatpush2.bf16.msra.mxu0 0
    %360 = vmatprep.subr.bf16.mxu0 0
    %361 = vmatpush2.bf16.msra.mxu0 0
    %362 = vmatprep.subr.bf16.mxu0 0
    %363 = vmatpush2.bf16.msra.mxu0 0
    %364 = vmatprep.subr.bf16.mxu0 0
    %365 = vmatpush2.bf16.msra.mxu0 0
    %366 = vmatprep.mubr.bf16.mxu0 0
    %367 = vmatmul.mubr.bf16.gmra.mxu0 %v332
    %v368 = vpop.f32.mrf.mxu0
    %v369 = vadd.f32 0.0, %v368
    %v370 = vpop.f32.mrf.mxu0
    %v371 = vpop.f32.mrf.mxu0
    %v372 = vpop.f32.mrf.mxu0
    %373 = vdwg.mxu0
    %v374 = vadd.f32 %v179, %v369
    %v375 = vxor.u32 %v374, 2147483648
    %v376 = vmul.f32 %v375, 1.442695
    %v377 = vpow.pop %v376
    %v378 = vadd.f32 %v377, 1.0
    %v379 = vrcp.pop %v378
    %v380 = vmul.f32 1.0, %v379
    %v381 = vtanh.pop %v374
    %v382 = vmul.f32 %v380, %v313
    %384 = vrot.lane.b32.xlu0 %v381, 64
    %v385 = vpop.permute.xlu0 %384
    %v387 = vmul.f32 %v380, %v385
    %389 = vrot.lane.b32.xlu0 %v387, 32
    %v390 = vpop.permute.xlu0 %389
    %v392 = vadd.f32 %v382, %v390
    %v393 = vtanh.pop %v392
    %395 = vrot.lane.b32.xlu0 %v393, 64
    %v396 = vpop.permute.xlu0 %395
    %v398 = vmul.f32 %v380, %v396
    %400 = vrot.lane.b32.xlu0 %v398, 32
    %v401 = vpop.permute.xlu0 %400
    %403 = vrot.lane.b32.xlu0 %v398, 64
    %v404 = vpop.permute.xlu0 %403
    %v406 = vsel %vm327, %v401, %v404
    %v407 = vmul.f32 %v406, %v224
    %v408 = vpack.c.bf16 %v407, %v407
    %v410 = vsel %vm251, %v408, 0
    %412 = vmatprep.subr.bf16.mxu0 0
    %413 = vmatpush1.bf16.msra.mxu0 0
    %414 = vmatprep.subr.bf16.mxu0 0
    %415 = vmatpush1.bf16.msra.mxu0 0
    %416 = vmatprep.subr.bf16.mxu0 0
    %417 = vmatpush1.bf16.msra.mxu0 0
    %418 = vmatprep.subr.bf16.mxu0 0
    %419 = vmatpush1.bf16.msra.mxu0 0
    %420 = vmatprep.subr.bf16.mxu0 0
    %421 = vmatpush1.bf16.msra.mxu0 %v246
    %422 = vmatprep.subr.bf16.mxu0 0
    %423 = vmatpush1.bf16.msra.mxu0 %v245
    %424 = vmatprep.subr.bf16.mxu0 0
    %425 = vmatpush1.bf16.msra.mxu0 %v244
    %426 = vmatprep.subr.bf16.mxu0 0
    %427 = vmatpush1.bf16.msra.mxu0 %v243
    %428 = vmatprep.subr.bf16.mxu0 0
    %429 = vmatpush2.bf16.msra.mxu0 0
    %430 = vmatprep.subr.bf16.mxu0 0
    %431 = vmatpush2.bf16.msra.mxu0 0
    %432 = vmatprep.subr.bf16.mxu0 0
    %433 = vmatpush2.bf16.msra.mxu0 0
    %434 = vmatprep.subr.bf16.mxu0 0
    %435 = vmatpush2.bf16.msra.mxu0 0
    %436 = vmatprep.subr.bf16.mxu0 0
    %437 = vmatpush2.bf16.msra.mxu0 0
    %438 = vmatprep.subr.bf16.mxu0 0
    %439 = vmatpush2.bf16.msra.mxu0 0
    %440 = vmatprep.subr.bf16.mxu0 0
    %441 = vmatpush2.bf16.msra.mxu0 0
    %442 = vmatprep.subr.bf16.mxu0 0
    %443 = vmatpush2.bf16.msra.mxu0 0
    %444 = vmatprep.mubr.bf16.mxu0 0
    %445 = vmatmul.mubr.bf16.gmra.mxu0 %v410
    %v446 = vpop.f32.mrf.mxu0
    %v447 = vadd.f32 0.0, %v446
    %v448 = vpop.f32.mrf.mxu0
    %v449 = vpop.f32.mrf.mxu0
    %v450 = vpop.f32.mrf.mxu0
    %451 = vdwg.mxu0
    %v452 = vadd.f32 %v180, %v447
    %v453 = vxor.u32 %v452, 2147483648
    %v454 = vmul.f32 %v453, 1.442695
    %v455 = vpow.pop %v454
    %v456 = vadd.f32 %v455, 1.0
    %v457 = vrcp.pop %v456
    %v458 = vmul.f32 1.0, %v457
    %v459 = vtanh.pop %v452
    %v460 = vmul.f32 %v458, %v392
    %462 = vrot.lane.b32.xlu0 %v459, 64
    %v463 = vpop.permute.xlu0 %462
    %v465 = vmul.f32 %v458, %v463
    %467 = vrot.lane.b32.xlu0 %v465, 32
    %v468 = vpop.permute.xlu0 %467
    %v470 = vadd.f32 %v460, %v468
    %v471 = vtanh.pop %v470
    %473 = vrot.lane.b32.xlu0 %v471, 64
    %v474 = vpop.permute.xlu0 %473
    %v476 = vmul.f32 %v458, %v474
    %478 = vrot.lane.b32.xlu0 %v476, 32
    %v479 = vpop.permute.xlu0 %478
    %481 = vrot.lane.b32.xlu0 %v476, 64
    %v482 = vpop.permute.xlu0 %481
    %v484 = vsel %vm327, %v479, %v482
    %v485 = vmul.f32 %v484, %v224
    %v486 = vpack.c.bf16 %v485, %v485
    %v488 = vsel %vm251, %v486, 0
    %490 = vmatprep.subr.bf16.mxu0 0
    %491 = vmatpush1.bf16.msra.mxu0 0
    %492 = vmatprep.subr.bf16.mxu0 0
    %493 = vmatpush1.bf16.msra.mxu0 0
    %494 = vmatprep.subr.bf16.mxu0 0
    %495 = vmatpush1.bf16.msra.mxu0 0
    %496 = vmatprep.subr.bf16.mxu0 0
    %497 = vmatpush1.bf16.msra.mxu0 0
    %498 = vmatprep.subr.bf16.mxu0 0
    %499 = vmatpush1.bf16.msra.mxu0 %v246
    %500 = vmatprep.subr.bf16.mxu0 0
    %501 = vmatpush1.bf16.msra.mxu0 %v245
    %502 = vmatprep.subr.bf16.mxu0 0
    %503 = vmatpush1.bf16.msra.mxu0 %v244
    %504 = vmatprep.subr.bf16.mxu0 0
    %505 = vmatpush1.bf16.msra.mxu0 %v243
    %506 = vmatprep.subr.bf16.mxu0 0
    %507 = vmatpush2.bf16.msra.mxu0 0
    %508 = vmatprep.subr.bf16.mxu0 0
    %509 = vmatpush2.bf16.msra.mxu0 0
    %510 = vmatprep.subr.bf16.mxu0 0
    %511 = vmatpush2.bf16.msra.mxu0 0
    %512 = vmatprep.subr.bf16.mxu0 0
    %513 = vmatpush2.bf16.msra.mxu0 0
    %514 = vmatprep.subr.bf16.mxu0 0
    %515 = vmatpush2.bf16.msra.mxu0 0
    %516 = vmatprep.subr.bf16.mxu0 0
    %517 = vmatpush2.bf16.msra.mxu0 0
    %518 = vmatprep.subr.bf16.mxu0 0
    %519 = vmatpush2.bf16.msra.mxu0 0
    %520 = vmatprep.subr.bf16.mxu0 0
    %521 = vmatpush2.bf16.msra.mxu0 0
    %522 = vmatprep.mubr.bf16.mxu0 0
    %523 = vmatmul.mubr.bf16.gmra.mxu0 %v488
    %v524 = vpop.f32.mrf.mxu0
    %v525 = vadd.f32 0.0, %v524
    %v526 = vpop.f32.mrf.mxu0
    %v527 = vpop.f32.mrf.mxu0
    %v528 = vpop.f32.mrf.mxu0
    %529 = vdwg.mxu0
    %v530 = vadd.f32 %v187, %v525
    %v531 = vxor.u32 %v530, 2147483648
    %v532 = vmul.f32 %v531, 1.442695
    %v533 = vpow.pop %v532
    %v534 = vadd.f32 %v533, 1.0
    %v535 = vrcp.pop %v534
    %v536 = vmul.f32 1.0, %v535
    %v537 = vtanh.pop %v530
    %v538 = vmul.f32 %v536, %v470
    %540 = vrot.lane.b32.xlu0 %v537, 64
    %v541 = vpop.permute.xlu0 %540
    %v543 = vmul.f32 %v536, %v541
    %545 = vrot.lane.b32.xlu0 %v543, 32
    %v546 = vpop.permute.xlu0 %545
    %v548 = vadd.f32 %v538, %v546
    %v549 = vtanh.pop %v548
    %551 = vrot.lane.b32.xlu0 %v549, 64
    %v552 = vpop.permute.xlu0 %551
    %v554 = vmul.f32 %v536, %v552
    %556 = vrot.lane.b32.xlu0 %v554, 32
    %v557 = vpop.permute.xlu0 %556
    %559 = vrot.lane.b32.xlu0 %v554, 64
    %v560 = vpop.permute.xlu0 %559
    %v562 = vsel %vm327, %v557, %v560
    %v563 = vmul.f32 %v562, %v224
    %v564 = vpack.c.bf16 %v563, %v563
    %v566 = vsel %vm251, %v564, 0
    %568 = vmatprep.subr.bf16.mxu0 0
    %569 = vmatpush1.bf16.msra.mxu0 0
    %570 = vmatprep.subr.bf16.mxu0 0
    %571 = vmatpush1.bf16.msra.mxu0 0
    %572 = vmatprep.subr.bf16.mxu0 0
    %573 = vmatpush1.bf16.msra.mxu0 0
    %574 = vmatprep.subr.bf16.mxu0 0
    %575 = vmatpush1.bf16.msra.mxu0 0
    %576 = vmatprep.subr.bf16.mxu0 0
    %577 = vmatpush1.bf16.msra.mxu0 %v246
    %578 = vmatprep.subr.bf16.mxu0 0
    %579 = vmatpush1.bf16.msra.mxu0 %v245
    %580 = vmatprep.subr.bf16.mxu0 0
    %581 = vmatpush1.bf16.msra.mxu0 %v244
    %582 = vmatprep.subr.bf16.mxu0 0
    %583 = vmatpush1.bf16.msra.mxu0 %v243
    %584 = vmatprep.subr.bf16.mxu0 0
    %585 = vmatpush2.bf16.msra.mxu0 0
    %586 = vmatprep.subr.bf16.mxu0 0
    %587 = vmatpush2.bf16.msra.mxu0 0
    %588 = vmatprep.subr.bf16.mxu0 0
    %589 = vmatpush2.bf16.msra.mxu0 0
    %590 = vmatprep.subr.bf16.mxu0 0
    %591 = vmatpush2.bf16.msra.mxu0 0
    %592 = vmatprep.subr.bf16.mxu0 0
    %593 = vmatpush2.bf16.msra.mxu0 0
    %594 = vmatprep.subr.bf16.mxu0 0
    %595 = vmatpush2.bf16.msra.mxu0 0
    %596 = vmatprep.subr.bf16.mxu0 0
    %597 = vmatpush2.bf16.msra.mxu0 0
    %598 = vmatprep.subr.bf16.mxu0 0
    %599 = vmatpush2.bf16.msra.mxu0 0
    %600 = vmatprep.mubr.bf16.mxu0 0
    %601 = vmatmul.mubr.bf16.gmra.mxu0 %v566
    %v602 = vpop.f32.mrf.mxu0
    %v603 = vadd.f32 0.0, %v602
    %v604 = vpop.f32.mrf.mxu0
    %v605 = vpop.f32.mrf.mxu0
    %v606 = vpop.f32.mrf.mxu0
    %607 = vdwg.mxu0
    %v608 = vadd.f32 %v188, %v603
    %v609 = vxor.u32 %v608, 2147483648
    %v610 = vmul.f32 %v609, 1.442695
    %v611 = vpow.pop %v610
    %v612 = vadd.f32 %v611, 1.0
    %v613 = vrcp.pop %v612
    %v614 = vmul.f32 1.0, %v613
    %v615 = vtanh.pop %v608
    %v616 = vmul.f32 %v614, %v548
    %618 = vrot.lane.b32.xlu0 %v615, 64
    %v619 = vpop.permute.xlu0 %618
    %v621 = vmul.f32 %v614, %v619
    %623 = vrot.lane.b32.xlu0 %v621, 32
    %v624 = vpop.permute.xlu0 %623
    %v626 = vadd.f32 %v616, %v624
    %v627 = vtanh.pop %v626
    %629 = vrot.lane.b32.xlu0 %v627, 64
    %v630 = vpop.permute.xlu0 %629
    %v632 = vmul.f32 %v614, %v630
    %634 = vrot.lane.b32.xlu0 %v632, 32
    %v635 = vpop.permute.xlu0 %634
    %637 = vrot.lane.b32.xlu0 %v632, 64
    %v638 = vpop.permute.xlu0 %637
    %v640 = vsel %vm327, %v635, %v638
    %v641 = vmul.f32 %v640, %v224
    %v642 = vpack.c.bf16 %v641, %v641
    %v644 = vsel %vm251, %v642, 0
    %646 = vmatprep.subr.bf16.mxu0 0
    %647 = vmatpush1.bf16.msra.mxu0 0
    %648 = vmatprep.subr.bf16.mxu0 0
    %649 = vmatpush1.bf16.msra.mxu0 0
    %650 = vmatprep.subr.bf16.mxu0 0
    %651 = vmatpush1.bf16.msra.mxu0 0
    %652 = vmatprep.subr.bf16.mxu0 0
    %653 = vmatpush1.bf16.msra.mxu0 0
    %654 = vmatprep.subr.bf16.mxu0 0
    %655 = vmatpush1.bf16.msra.mxu0 %v246
    %656 = vmatprep.subr.bf16.mxu0 0
    %657 = vmatpush1.bf16.msra.mxu0 %v245
    %658 = vmatprep.subr.bf16.mxu0 0
    %659 = vmatpush1.bf16.msra.mxu0 %v244
    %660 = vmatprep.subr.bf16.mxu0 0
    %661 = vmatpush1.bf16.msra.mxu0 %v243
    %662 = vmatprep.subr.bf16.mxu0 0
    %663 = vmatpush2.bf16.msra.mxu0 0
    %664 = vmatprep.subr.bf16.mxu0 0
    %665 = vmatpush2.bf16.msra.mxu0 0
    %666 = vmatprep.subr.bf16.mxu0 0
    %667 = vmatpush2.bf16.msra.mxu0 0
    %668 = vmatprep.subr.bf16.mxu0 0
    %669 = vmatpush2.bf16.msra.mxu0 0
    %670 = vmatprep.subr.bf16.mxu0 0
    %671 = vmatpush2.bf16.msra.mxu0 0
    %672 = vmatprep.subr.bf16.mxu0 0
    %673 = vmatpush2.bf16.msra.mxu0 0
    %674 = vmatprep.subr.bf16.mxu0 0
    %675 = vmatpush2.bf16.msra.mxu0 0
    %676 = vmatprep.subr.bf16.mxu0 0
    %677 = vmatpush2.bf16.msra.mxu0 0
    %678 = vmatprep.mubr.bf16.mxu0 0
    %679 = vmatmul.mubr.bf16.gmra.mxu0 %v644
    %v680 = vpop.f32.mrf.mxu0
    %v681 = vadd.f32 0.0, %v680
    %v682 = vpop.f32.mrf.mxu0
    %v683 = vpop.f32.mrf.mxu0
    %v684 = vpop.f32.mrf.mxu0
    %685 = vdwg.mxu0
    %v686 = vadd.f32 %v195, %v681
    %v687 = vxor.u32 %v686, 2147483648
    %v688 = vmul.f32 %v687, 1.442695
    %v689 = vpow.pop %v688
    %v690 = vadd.f32 %v689, 1.0
    %v691 = vrcp.pop %v690
    %v692 = vmul.f32 1.0, %v691
    %v693 = vtanh.pop %v686
    %v694 = vmul.f32 %v692, %v626
    %696 = vrot.lane.b32.xlu0 %v693, 64
    %v697 = vpop.permute.xlu0 %696
    %v699 = vmul.f32 %v692, %v697
    %701 = vrot.lane.b32.xlu0 %v699, 32
    %v702 = vpop.permute.xlu0 %701
    %v704 = vadd.f32 %v694, %v702
    %v705 = vtanh.pop %v704
    %707 = vrot.lane.b32.xlu0 %v705, 64
    %v708 = vpop.permute.xlu0 %707
    %v710 = vmul.f32 %v692, %v708
    %712 = vrot.lane.b32.xlu0 %v710, 32
    %v713 = vpop.permute.xlu0 %712
    %715 = vrot.lane.b32.xlu0 %v710, 64
    %v716 = vpop.permute.xlu0 %715
    %v718 = vsel %vm327, %v713, %v716
    %v719 = vmul.f32 %v718, %v224
    %v720 = vpack.c.bf16 %v719, %v719
    %v722 = vsel %vm251, %v720, 0
    %724 = vmatprep.subr.bf16.mxu0 0
    %725 = vmatpush1.bf16.msra.mxu0 0
    %726 = vmatprep.subr.bf16.mxu0 0
    %727 = vmatpush1.bf16.msra.mxu0 0
    %728 = vmatprep.subr.bf16.mxu0 0
    %729 = vmatpush1.bf16.msra.mxu0 0
    %730 = vmatprep.subr.bf16.mxu0 0
    %731 = vmatpush1.bf16.msra.mxu0 0
    %732 = vmatprep.subr.bf16.mxu0 0
    %733 = vmatpush1.bf16.msra.mxu0 %v246
    %734 = vmatprep.subr.bf16.mxu0 0
    %735 = vmatpush1.bf16.msra.mxu0 %v245
    %736 = vmatprep.subr.bf16.mxu0 0
    %737 = vmatpush1.bf16.msra.mxu0 %v244
    %738 = vmatprep.subr.bf16.mxu0 0
    %739 = vmatpush1.bf16.msra.mxu0 %v243
    %740 = vmatprep.subr.bf16.mxu0 0
    %741 = vmatpush2.bf16.msra.mxu0 0
    %742 = vmatprep.subr.bf16.mxu0 0
    %743 = vmatpush2.bf16.msra.mxu0 0
    %744 = vmatprep.subr.bf16.mxu0 0
    %745 = vmatpush2.bf16.msra.mxu0 0
    %746 = vmatprep.subr.bf16.mxu0 0
    %747 = vmatpush2.bf16.msra.mxu0 0
    %748 = vmatprep.subr.bf16.mxu0 0
    %749 = vmatpush2.bf16.msra.mxu0 0
    %750 = vmatprep.subr.bf16.mxu0 0
    %751 = vmatpush2.bf16.msra.mxu0 0
    %752 = vmatprep.subr.bf16.mxu0 0
    %753 = vmatpush2.bf16.msra.mxu0 0
    %754 = vmatprep.subr.bf16.mxu0 0
    %755 = vmatpush2.bf16.msra.mxu0 0
    %756 = vmatprep.mubr.bf16.mxu0 0
    %757 = vmatmul.mubr.bf16.gmra.mxu0 %v722
    %v758 = vpop.f32.mrf.mxu0
    %v759 = vadd.f32 0.0, %v758
    %v760 = vpop.f32.mrf.mxu0
    %v761 = vpop.f32.mrf.mxu0
    %v762 = vpop.f32.mrf.mxu0
    %763 = vdwg.mxu0
    %v764 = vadd.f32 %v196, %v759
    %v765 = vxor.u32 %v764, 2147483648
    %v766 = vmul.f32 %v765, 1.442695
    %v767 = vpow.pop %v766
    %v768 = vadd.f32 %v767, 1.0
    %v769 = vrcp.pop %v768
    %v770 = vmul.f32 1.0, %v769
    %v771 = vtanh.pop %v764
    %v772 = vmul.f32 %v770, %v704
    %774 = vrot.lane.b32.xlu0 %v771, 64
    %v775 = vpop.permute.xlu0 %774
    %v777 = vmul.f32 %v770, %v775
    %779 = vrot.lane.b32.xlu0 %v777, 32
    %v780 = vpop.permute.xlu0 %779
    %v782 = vadd.f32 %v772, %v780
    %v783 = vtanh.pop %v782
    %785 = vrot.lane.b32.xlu0 %v783, 64
    %v786 = vpop.permute.xlu0 %785
    %v788 = vmul.f32 %v770, %v786
    %790 = vrot.lane.b32.xlu0 %v788, 32
    %v791 = vpop.permute.xlu0 %790
    %793 = vrot.lane.b32.xlu0 %v788, 64
    %v794 = vpop.permute.xlu0 %793
    %v796 = vsel %vm327, %v791, %v794
    %v797 = vmul.f32 %v796, %v224
    %v798 = vpack.c.bf16 %v797, %v797
    %v800 = vsel %vm251, %v798, 0
    %802 = vmatprep.subr.bf16.mxu0 0
    %803 = vmatpush1.bf16.msra.mxu0 0
    %804 = vmatprep.subr.bf16.mxu0 0
    %805 = vmatpush1.bf16.msra.mxu0 0
    %806 = vmatprep.subr.bf16.mxu0 0
    %807 = vmatpush1.bf16.msra.mxu0 0
    %808 = vmatprep.subr.bf16.mxu0 0
    %809 = vmatpush1.bf16.msra.mxu0 0
    %810 = vmatprep.subr.bf16.mxu0 0
    %811 = vmatpush1.bf16.msra.mxu0 %v246
    %812 = vmatprep.subr.bf16.mxu0 0
    %813 = vmatpush1.bf16.msra.mxu0 %v245
    %814 = vmatprep.subr.bf16.mxu0 0
    %815 = vmatpush1.bf16.msra.mxu0 %v244
    %816 = vmatprep.subr.bf16.mxu0 0
    %817 = vmatpush1.bf16.msra.mxu0 %v243
    %818 = vmatprep.subr.bf16.mxu0 0
    %819 = vmatpush2.bf16.msra.mxu0 0
    %820 = vmatprep.subr.bf16.mxu0 0
    %821 = vmatpush2.bf16.msra.mxu0 0
    %822 = vmatprep.subr.bf16.mxu0 0
    %823 = vmatpush2.bf16.msra.mxu0 0
    %824 = vmatprep.subr.bf16.mxu0 0
    %825 = vmatpush2.bf16.msra.mxu0 0
    %826 = vmatprep.subr.bf16.mxu0 0
    %827 = vmatpush2.bf16.msra.mxu0 0
    %828 = vmatprep.subr.bf16.mxu0 0
    %829 = vmatpush2.bf16.msra.mxu0 0
    %830 = vmatprep.subr.bf16.mxu0 0
    %831 = vmatpush2.bf16.msra.mxu0 0
    %832 = vmatprep.subr.bf16.mxu0 0
    %833 = vmatpush2.bf16.msra.mxu0 0
    %834 = vmatprep.mubr.bf16.mxu0 0
    %835 = vmatmul.mubr.bf16.gmra.mxu0 %v800
    %v836 = vpop.f32.mrf.mxu0
    %v837 = vadd.f32 0.0, %v836
    %v838 = vpop.f32.mrf.mxu0
    %v839 = vpop.f32.mrf.mxu0
    %v840 = vpop.f32.mrf.mxu0
    %841 = vdwg.mxu0
    %v842 = vadd.f32 %v203, %v837
    %v843 = vxor.u32 %v842, 2147483648
    %v844 = vmul.f32 %v843, 1.442695
    %v845 = vpow.pop %v844
    %v846 = vadd.f32 %v845, 1.0
    %v847 = vrcp.pop %v846
    %v848 = vmul.f32 1.0, %v847
    %v849 = vtanh.pop %v842
    %v850 = vmul.f32 %v848, %v782
    %852 = vrot.lane.b32.xlu0 %v849, 64
    %v853 = vpop.permute.xlu0 %852
    %v855 = vmul.f32 %v848, %v853
    %857 = vrot.lane.b32.xlu0 %v855, 32
    %v858 = vpop.permute.xlu0 %857
    %v860 = vadd.f32 %v850, %v858
    %v861 = vtanh.pop %v860
    %863 = vrot.lane.b32.xlu0 %v861, 64
    %v864 = vpop.permute.xlu0 %863
    %v866 = vmul.f32 %v848, %v864
    %v868 = vrot.slane %v866, 4
    %869 = vrot.lane.b32.xlu0 %v868, 64
    %v870 = vpop.permute.xlu0 %869
    %v872 = vsel %vm327, %v322, %v870
    %v873 = vrot.slane %v788, 4
    %874 = vrot.lane.b32.xlu0 %v873, 64
    %v875 = vpop.permute.xlu0 %874
    %v877 = vsel %vm327, %v401, %v875
    %v878 = vrot.slane %v710, 4
    %879 = vrot.lane.b32.xlu0 %v878, 64
    %v880 = vpop.permute.xlu0 %879
    %v882 = vsel %vm327, %v479, %v880
    %v883 = vrot.slane %v632, 4
    %884 = vrot.lane.b32.xlu0 %v883, 64
    %v885 = vpop.permute.xlu0 %884
    %v887 = vsel %vm327, %v557, %v885
    %v888 = vrot.slane %v554, 4
    %889 = vrot.lane.b32.xlu0 %v888, 64
    %v890 = vpop.permute.xlu0 %889
    %v892 = vsel %vm327, %v635, %v890
    %v893 = vrot.slane %v476, 4
    %894 = vrot.lane.b32.xlu0 %v893, 64
    %v895 = vpop.permute.xlu0 %894
    %v897 = vsel %vm327, %v713, %v895
    %v898 = vrot.slane %v398, 4
    %899 = vrot.lane.b32.xlu0 %v898, 64
    %v900 = vpop.permute.xlu0 %899
    %v902 = vsel %vm327, %v791, %v900
    %903 = vrot.lane.b32.xlu0 %v866, 32
    %v904 = vpop.permute.xlu0 %903
    %v906 = vrot.slane %v319, 4
    %907 = vrot.lane.b32.xlu0 %v906, 64
    %v908 = vpop.permute.xlu0 %907
    %v910 = vsel %vm327, %v904, %v908
    %v912 = vrot.slane %v877, 4
    %v915 = vrot.slane %v887, 4
    %v918 = vrot.slane %v897, 4
    %v921 = vrot.slane %v910, 4
    %v923 = vsel %vm171, %v872, %v912
    %v924 = vsel %vm171, %v882, %v915
    %v925 = vsel %vm171, %v892, %v918
    %v926 = vsel %vm171, %v902, %v921
    %927 = vst.msk [vmem:[#allocation8] sm:$0xff] %vm251, %v923
    %928 = vst.msk [vmem:[#allocation8 + $0x8] sm:$0xff] %vm251, %v924
    %929 = vst.msk [vmem:[#allocation8 + $0x10] sm:$0xff] %vm251, %v925
    %930 = vst.msk [vmem:[#allocation8 + $0x18] sm:$0xff] %vm251, %v926
    %v931 = vpack.c.bf16 %v866, %v866
    %v932 = vld [vmem:[#allocation7] sm:$0xf]
    %v933 = vld [vmem:[#allocation7 + $0x4] sm:$0xf]
    %v934 = vld [vmem:[#allocation7 + $0x8] sm:$0xf]
    %v935 = vld [vmem:[#allocation7 + $0xc] sm:$0xf]
    %v936 = vld [vmem:[%s5] sm:$0x1]
    %v938 = vlaneseq
    %v939 = vshrl.u32 %v938, 7
    %v940 = vsub.s32 0, %v939
    %v941 = vrot.slane %v936, %v940
    %944 = vrot.lane.b32.xlu0 %v931, 32
    %v945 = vpop.permute.xlu0 %944
    %v950 = vunpack.c.l.b16 %v932
    %v951 = vunpack.c.l.b16 %v933
    %v952 = vunpack.c.l.b16 %v934
    %v953 = vunpack.c.l.b16 %v935
    %v954 = vpack.c.b16 %v951, %v950
    %v955 = vpack.c.b16 %v953, %v952
    %v959 = vsel %vm327, %v945, 0
    %961 = vmatprep.subr.bf16.mxu0 0
    %962 = vmatpush1.bf16.msra.mxu0 0
    %963 = vmatprep.subr.bf16.mxu0 0
    %964 = vmatpush1.bf16.msra.mxu0 0
    %965 = vmatprep.subr.bf16.mxu0 0
    %966 = vmatpush1.bf16.msra.mxu0 0
    %967 = vmatprep.subr.bf16.mxu0 0
    %968 = vmatpush1.bf16.msra.mxu0 0
    %969 = vmatprep.subr.bf16.mxu0 0
    %970 = vmatpush1.bf16.msra.mxu0 0
    %971 = vmatprep.subr.bf16.mxu0 0
    %972 = vmatpush1.bf16.msra.mxu0 0
    %973 = vmatprep.subr.bf16.mxu0 0
    %974 = vmatpush1.bf16.msra.mxu0 %v955
    %975 = vmatprep.subr.bf16.mxu0 0
    %976 = vmatpush1.bf16.msra.mxu0 %v954
    %977 = vmatprep.subr.bf16.mxu0 0
    %978 = vmatpush2.bf16.msra.mxu0 0
    %979 = vmatprep.subr.bf16.mxu0 0
    %980 = vmatpush2.bf16.msra.mxu0 0
    %981 = vmatprep.subr.bf16.mxu0 0
    %982 = vmatpush2.bf16.msra.mxu0 0
    %983 = vmatprep.subr.bf16.mxu0 0
    %984 = vmatpush2.bf16.msra.mxu0 0
    %985 = vmatprep.subr.bf16.mxu0 0
    %986 = vmatpush2.bf16.msra.mxu0 0
    %987 = vmatprep.subr.bf16.mxu0 0
    %988 = vmatpush2.bf16.msra.mxu0 0
    %989 = vmatprep.subr.bf16.mxu0 0
    %990 = vmatpush2.bf16.msra.mxu0 0
    %991 = vmatprep.subr.bf16.mxu0 0
    %992 = vmatpush2.bf16.msra.mxu0 0
    %993 = vmatprep.mubr.bf16.mxu0 0
    %994 = vmatmul.mubr.bf16.gmra.mxu0 %v959
    %v995 = vpop.f32.mrf.mxu0
    %v996 = vadd.f32 %v941, %v995
    %v997 = vpop.f32.mrf.mxu0
    %v998 = vpop.f32.mrf.mxu0
    %v999 = vpop.f32.mrf.mxu0
    %1000 = vdwg.mxu0
    %v1001 = vmax.f32 %v996, 0.0
    %v1002 = vpack.c.bf16 %v1001, %v1001
    %v1003 = vld [vmem:[%s6] sm:$0xf]
    %v1004 = vld [vmem:[%s6 + $0x4] sm:$0xf]
    %v1005 = vld [vmem:[%s6 + $0x8] sm:$0xf]
    %v1006 = vld [vmem:[%s6 + $0xc] sm:$0xf]
    %v1007 = vld [vmem:[%s7] sm:$0x1]
    %v1009 = vlaneseq
    %v1010 = vshrl.u32 %v1009, 7
    %v1011 = vsub.s32 0, %v1010
    %v1012 = vrot.slane %v1007, %v1011
    %v1018 = vunpack.c.l.b16 %v1003
    %v1019 = vunpack.c.l.b16 %v1004
    %v1020 = vunpack.c.l.b16 %v1005
    %v1021 = vunpack.c.l.b16 %v1006
    %v1022 = vpack.c.b16 %v1019, %v1018
    %v1023 = vpack.c.b16 %v1021, %v1020
    %v1027 = vsel %vm327, %v1002, 0
    %1029 = vmatprep.subr.bf16.mxu0 0
    %1030 = vmatpush1.bf16.msra.mxu0 0
    %1031 = vmatprep.subr.bf16.mxu0 0
    %1032 = vmatpush1.bf16.msra.mxu0 0
    %1033 = vmatprep.subr.bf16.mxu0 0
    %1034 = vmatpush1.bf16.msra.mxu0 0
    %1035 = vmatprep.subr.bf16.mxu0 0
    %1036 = vmatpush1.bf16.msra.mxu0 0
    %1037 = vmatprep.subr.bf16.mxu0 0
    %1038 = vmatpush1.bf16.msra.mxu0 0
    %1039 = vmatprep.subr.bf16.mxu0 0
    %1040 = vmatpush1.bf16.msra.mxu0 0
    %1041 = vmatprep.subr.bf16.mxu0 0
    %1042 = vmatpush1.bf16.msra.mxu0 %v1023
    %1043 = vmatprep.subr.bf16.mxu0 0
    %1044 = vmatpush1.bf16.msra.mxu0 %v1022
    %1045 = vmatprep.subr.bf16.mxu0 0
    %1046 = vmatpush2.bf16.msra.mxu0 0
    %1047 = vmatprep.subr.bf16.mxu0 0
    %1048 = vmatpush2.bf16.msra.mxu0 0
    %1049 = vmatprep.subr.bf16.mxu0 0
    %1050 = vmatpush2.bf16.msra.mxu0 0
    %1051 = vmatprep.subr.bf16.mxu0 0
    %1052 = vmatpush2.bf16.msra.mxu0 0
    %1053 = vmatprep.subr.bf16.mxu0 0
    %1054 = vmatpush2.bf16.msra.mxu0 0
    %1055 = vmatprep.subr.bf16.mxu0 0
    %1056 = vmatpush2.bf16.msra.mxu0 0
    %1057 = vmatprep.subr.bf16.mxu0 0
    %1058 = vmatpush2.bf16.msra.mxu0 0
    %1059 = vmatprep.subr.bf16.mxu0 0
    %1060 = vmatpush2.bf16.msra.mxu0 0
    %1061 = vmatprep.mubr.bf16.mxu0 0
    %1062 = vmatmul.mubr.bf16.gmra.mxu0 %v1027
    %v1063 = vpop.f32.mrf.mxu0
    %v1064 = vadd.f32 %v1012, %v1063
    %v1065 = vpop.f32.mrf.mxu0
    %v1066 = vpop.f32.mrf.mxu0
    %v1067 = vpop.f32.mrf.mxu0
    %1068 = vdwg.mxu0
    %v1069 = vtanh.pop %v1064
    %1070 = vst.msk [vmem:[#allocation9] sm:$0xff] %vm327, %v1069
    // Predicated region
    $region46: #{tpu_custom_call.1} parent=1 // pred_check
      _
    $region47: #{tpu_custom_call.1} parent=1 // pred_check_branch
      %1072 = sbr.rel (0) target = $region49
    $region48: #{tpu_custom_call.1} parent=1 // pred_region
      %s1074 = ssub.s32 512, 512
      %1075 = vsyncadd [#allocation4], %s1074
      %s1076 = sshll.u32 [#allocation8], 4
      %s1077 = int_to_ptr.vmem [resolvable:$true] %s1076
      %1082 = dma.vmem_to_hbm [thread:$0]  %s1077, 512, %s8, [#allocation4], 128, 128, 8
    $region49: #{tpu_custom_call.1} parent=1 // pred_fallthru
      _
    // Predicated region
    $region50: #{tpu_custom_call.1} parent=1 // pred_check
      _
    $region51: #{tpu_custom_call.1} parent=1 // pred_check_branch
      %1084 = sbr.rel (0) target = $region53
    $region52: #{tpu_custom_call.1} parent=1 // pred_region
      %s1086 = ssub.s32 128, 128
      %1087 = vsyncadd [#allocation10], %s1086
      %s1089 = sshll.u32 [#allocation9], 4
      %s1090 = int_to_ptr.vmem [resolvable:$true] %s1089
      %1092 = dma.vmem_to_hbm [thread:$0]  %s1090, 128, %s9, [#allocation10]
    $region53: #{tpu_custom_call.1} parent=1 // pred_fallthru
      _
    // Predicated region
    $region54: #{tpu_custom_call.1} parent=1 // pred_check
      _
    $region55: #{tpu_custom_call.1} parent=1 // pred_check_branch
      %1094 = sbr.rel (0) target = $region57
    $region56: #{tpu_custom_call.1} parent=1 // pred_region
      %1095 = dma.done [#allocation4], 512
    $region57: #{tpu_custom_call.1} parent=1 // pred_fallthru
      _
    // Predicated region
    $region58: #{tpu_custom_call.1} parent=1 // pred_check
      _
    $region59: #{tpu_custom_call.1} parent=1 // pred_check_branch
      %1097 = sbr.rel (0) target = $region61
    $region60: #{tpu_custom_call.1} parent=1 // pred_region
      %1098 = dma.done [#allocation10], 128
    $region61: #{tpu_custom_call.1} parent=1 // pred_fallthru
      _
    %1099 = vsyncpa [#allocation3], 1
    %1100 = vsyncpa [#allocation6], 1
    %1101 = vsyncpa [#allocation4], 1
    %1102 = vsyncpa [#allocation10], 1

</llo_original>
